<compile_context>
chip_gen: v7x
topology: tpu7x:2x2x1
jax: 0.10.0
libtpu: 0.0.40
codegen_flags: <defaults>
</compile_context>

<pallas_src>
import jax
import jax.numpy as jnp
from jax.experimental import pallas as pl
from jax.experimental.pallas import tpu as pltpu


_MAX_FULL_UNROLL = 32                 # full unroll below this, fori_loop above
_VMEM_BUDGET = 40 * 1024 * 1024       # tile-sizing budget (fits v7x's 64 MiB)
_VMEM_LIMIT = 48 * 1024 * 1024        # scoped-VMEM limit handed to Mosaic


def _rnn_fc_kernel(x_ref,                                  # (Bt, Tc, Din) chunk
                   wx_hbm, wh_hbm, b_hbm, wfc_hbm, bfc_hbm,  # HBM (pl.ANY)
                   out_ref,                                # (Bt, Tc, O)
                   wx_v, wh_v, b_v, wfc_v, bfc_v,          # persistent VMEM weights
                   h_carry,                                # (Bt, H) state across chunks
                   h_all):                                 # (Bt, Tc, H) xp then h_t
    Bt, Tc, Din = x_ref.shape
    H = wh_v.shape[0]
    O = wfc_v.shape[1]

    # First time-chunk of every batch tile: reset the hidden state and pull the
    # loop-invariant weights HBM -> VMEM exactly once; they stay resident in
    # scratch for all later chunks (single-buffered, no per-chunk re-fetch).
    @pl.when(pl.program_id(1) == 0)
    def _():
        h_carry[...] = jnp.zeros_like(h_carry)
        pltpu.sync_copy(wx_hbm, wx_v)
        pltpu.sync_copy(wh_hbm, wh_v)
        pltpu.sync_copy(b_hbm, b_v)
        pltpu.sync_copy(wfc_hbm, wfc_v)
        pltpu.sync_copy(bfc_hbm, bfc_v)

    # ---- hoisted input projection for the whole chunk (one MXU matmul), ----
    # ---- streamed through h_all so the recurrence keeps one live tile.  ----
    x2d = x_ref[...].reshape(Bt * Tc, Din)
    xp = jnp.dot(x2d, wx_v[...], preferred_element_type=jnp.float32) + b_v[...]
    h_all[...] = xp.reshape(Bt, Tc, H)

    # ---- serial recurrence: only h @ W_hh remains on the per-step path ----
    wh = wh_v[...]                                         # hoisted, loop-invariant
    if Tc <= _MAX_FULL_UNROLL:
        h = h_carry[...]
        for t in range(Tc):                                # static slices
            h = jnp.tanh(h_all[:, t, :]
                         + jnp.dot(h, wh, preferred_element_type=jnp.float32))
            h_all[:, t, :] = h
        h_carry[...] = h
    else:
        def step(t, h):
            xp_t = h_all[:, pl.ds(t, 1), :].reshape(Bt, H)
            h = jnp.tanh(xp_t + jnp.dot(h, wh, preferred_element_type=jnp.float32))
            h_all[:, pl.ds(t, 1), :] = h.reshape(Bt, 1, H)
            return h
        h_carry[...] = jax.lax.fori_loop(0, Tc, step, h_carry[...], unroll=8)

    # ---- batched fc + ReLU over the chunk: one MXU matmul, one block store ----
    h2d = h_all[...].reshape(Bt * Tc, H)
    y = jnp.dot(h2d, wfc_v[...], preferred_element_type=jnp.float32) + bfc_v[...]
    out_ref[...] = jnp.maximum(y, 0.0).reshape(Bt, Tc, O)


def _pick_tiles(B, T, Din, H, O, batch_tile, time_chunk):
    """Choose (Bt, Tc): keep the MXU M-dim big, size Tc from the VMEM budget."""
    if batch_tile is not None:
        Bt = batch_tile
    elif B >= 16 and B % 2 == 0:
        Bt = B // 2          # v7x megacore: 2 tiles, each still >= 8 rows
    else:
        Bt = B               # 1-TC chips / small B: never shrink the M-dim
    assert B % Bt == 0

    def vmem_bytes(Tc):
        per = Bt * Tc
        bufs = (2 * per * Din      # x chunk (double-buffered by the pipeline)
                + 2 * per * O      # out chunk (double-buffered)
                + per * H          # h_all scratch (xp then hidden states)
                + Bt * H)          # hidden-state carry
        weights = Din * H + H * H + H + H * O + O   # one VMEM copy (no dbl-buf)
        return 4 * (bufs + weights)

    if time_chunk is not None:
        Tc = time_chunk
    else:
        # Candidates: whole T, or divisors of T that are multiples of 8 so the
        # (Bt, Tc, *) blocks and in-kernel reshapes stay sublane-tile aligned.
        cands = [T] + [d for d in range(8, T, 8) if T % d == 0]
        fitting = [c for c in cands if vmem_bytes(c) <= _VMEM_BUDGET]
        Tc = max(fitting) if fitting else min(cands)
    assert T % Tc == 0
    return Bt, Tc


def rnn_forward(x, params, *, time_chunk=None, batch_tile=None):
    """x: (B, T, input_dim) float32, batch_first -> (B, T, output_dim) float32."""
    B, T, Din = x.shape
    wx, wh, b, wfc, bfc = (params["wx"], params["wh"], params["b"],
                           params["wfc"], params["bfc"])
    H = wh.shape[0]
    O = wfc.shape[1]

    Bt, Tc = _pick_tiles(B, T, Din, H, O, batch_tile, time_chunk)
    nb, nc = B // Bt, T // Tc

    hbm = pl.BlockSpec(memory_space=pl.ANY)   # weights stay in HBM; DMA'd once

    out = pl.pallas_call(
        _rnn_fc_kernel,
        out_shape=jax.ShapeDtypeStruct((B, T, O), jnp.float32),
        grid_spec=pltpu.PrefetchScalarGridSpec(
            num_scalar_prefetch=0,
            grid=(nb, nc),                               # (batch tiles, time chunks)
            in_specs=[
                pl.BlockSpec((Bt, Tc, Din), lambda bb, cc: (bb, cc, 0)),  # x chunk
                hbm, hbm, hbm, hbm, hbm,                  # wx, wh, b, wfc, bfc
            ],
            out_specs=pl.BlockSpec((Bt, Tc, O), lambda bb, cc: (bb, cc, 0)),
            scratch_shapes=[
                pltpu.VMEM((Din, H), jnp.float32),       # wx  (persistent copy)
                pltpu.VMEM((H, H), jnp.float32),         # wh
                pltpu.VMEM((1, H), jnp.float32),         # b
                pltpu.VMEM((H, O), jnp.float32),         # wfc
                pltpu.VMEM((1, O), jnp.float32),         # bfc
                pltpu.VMEM((Bt, H), jnp.float32),        # hidden-state carry
                pltpu.VMEM((Bt, Tc, H), jnp.float32),    # xp / chunk hidden states
            ],
        ),
        compiler_params=pltpu.CompilerParams(
            # Batch tiles are independent -> "parallel" (v7x megacore).  The
            # time axis carries the recurrence through VMEM scratch, so it must
            # stay the innermost, in-order axis and be marked "arbitrary".
            dimension_semantics=("parallel", "arbitrary"),
            vmem_limit_bytes=_VMEM_LIMIT),
    )(x, wx, wh, b, wfc, bfc)
    return out


# ---------------- pure-JAX reference (for correctness check) ----------------
def rnn_ref(x, p):
    B = x.shape[0]
    H = p["wh"].shape[0]
    x_tm = jnp.transpose(x, (1, 0, 2))                     # (T, B, Din)

    def step(h, x_t):
        h = jnp.tanh(x_t @ p["wx"] + h @ p["wh"] + p["b"][0])
        return h, h

    _, hs = jax.lax.scan(step, jnp.zeros((B, H), jnp.float32), x_tm)
    out = jnp.maximum(hs @ p["wfc"] + p["bfc"][0], 0.0)    # (T, B, O)
    return jnp.transpose(out, (1, 0, 2))                   # (B, T, O)


def init_params(key, input_dim, hidden_dim, output_dim):
    """Deterministic init mimicking PyTorch's U(-1/sqrt(H), 1/sqrt(H))."""
    H = hidden_dim
    k = 1.0 / jnp.sqrt(jnp.float32(H))
    keys = jax.random.split(key, 5)
    u = lambda kk, shape: jax.random.uniform(kk, shape, jnp.float32, -k, k)
    # weights stored pre-transposed so the kernel does x @ W
    return {
        "wx":  u(keys[0], (input_dim, H)),    # W_ih^T
        "wh":  u(keys[1], (H, H)),            # W_hh^T
        "b":   u(keys[2], (1, H)),            # b_ih + b_hh folded into one bias
        "wfc": u(keys[3], (H, output_dim)),   # fc.weight^T
        "bfc": u(keys[4], (1, output_dim)),   # fc.bias
    }


if __name__ == "__main__":
    B, T, input_dim, hidden_dim, output_dim = 2, 16, 4, 32, 4

    key = jax.random.PRNGKey(0)
    kx, kp = jax.random.split(key)
    x = jax.random.normal(kx, (B, T, input_dim), jnp.float32)
    params = init_params(kp, input_dim, hidden_dim, output_dim)

    out = rnn_forward(x, params)          # Bt=B=2, Tc=T=16 -> grid (1, 1)
    out = jax.block_until_ready(out)

    ref = rnn_ref(x, params)
    assert out.shape == (B, T, output_dim)
    assert jnp.allclose(out, ref, atol=1e-4, rtol=1e-4), "mismatch vs reference"

    print("KERNEL_OK")
</pallas_src>

<mosaic_0001>
module attributes {stable_mosaic.version = 11 : i64} {
  func.func @_rnn_fc_kernel(%arg0: i32, %arg1: i32, %arg2: memref<2x16x4xf32, #tpu.memory_space<vmem>>, %arg3: memref<4x32xf32, #tpu.memory_space<any>>, %arg4: memref<32x32xf32, #tpu.memory_space<any>>, %arg5: memref<1x32xf32, #tpu.memory_space<any>>, %arg6: memref<32x4xf32, #tpu.memory_space<any>>, %arg7: memref<1x4xf32, #tpu.memory_space<any>>, %arg8: memref<2x16x4xf32, #tpu.memory_space<vmem>>, %arg9: memref<4x32xf32, #tpu.memory_space<vmem>>, %arg10: memref<32x32xf32, #tpu.memory_space<vmem>>, %arg11: memref<1x32xf32, #tpu.memory_space<vmem>>, %arg12: memref<32x4xf32, #tpu.memory_space<vmem>>, %arg13: memref<1x4xf32, #tpu.memory_space<vmem>>, %arg14: memref<2x32xf32, #tpu.memory_space<vmem>>, %arg15: memref<2x16x32xf32, #tpu.memory_space<vmem>>) attributes {dimension_semantics = [#tpu.dimension_semantics<parallel>, #tpu.dimension_semantics<arbitrary>], iteration_bounds = array<i64: 1, 1>, scalar_prefetch = 0 : i64, scratch_operands = 7 : i64, tpu.core_type = #tpu.core_type<tc>, window_params = [{transform_indices = @transform_0, window_bounds = array<i64: 2, 16, 4>}, {}, {}, {}, {}, {}, {transform_indices = @transform_6, window_bounds = array<i64: 2, 16, 4>}]} {
    %c0_i32 = arith.constant 0 : i32
    %0 = arith.cmpi eq, %arg1, %c0_i32 : i32
    %1 = arith.extui %0 : i1 to i32
    %c0_i32_0 = arith.constant 0 : i32
    %2 = arith.cmpi ne, %1, %c0_i32_0 : i32
    scf.if %2 {
      %cst_125 = arith.constant 0.000000e+00 : f32
      %154 = vector.broadcast %cst_125 : f32 to vector<2x32xf32>
      %c0_126 = arith.constant 0 : index
      %c0_127 = arith.constant 0 : index
      %155 = vector.load %arg14[%c0_126, %c0_127] : memref<2x32xf32, #tpu.memory_space<vmem>>, vector<2x32xf32>
      tpu.vector_store %arg14[%c0_126, %c0_127], %154 {strides = array<i32>} : memref<2x32xf32, #tpu.memory_space<vmem>>, vector<2x32xf32>,
      "tpu.region"() ({
        %156 = tpu.sem_alloc : memref<!tpu.dma_semaphore, #tpu.memory_space<semaphore_mem>>
        tpu.enqueue_dma source(%arg3 : memref<4x32xf32, #tpu.memory_space<any>>) target(%arg9 : memref<4x32xf32, #tpu.memory_space<vmem>>) target_semaphore(%156 : memref<!tpu.dma_semaphore, #tpu.memory_space<semaphore_mem>>)
        tpu.wait_dma2 semaphore(%156 : memref<!tpu.dma_semaphore, #tpu.memory_space<semaphore_mem>>) src(%arg3 : memref<4x32xf32, #tpu.memory_space<any>>) dst(%arg9 : memref<4x32xf32, #tpu.memory_space<vmem>>)
        tpu.yield
      }) : () -> ()
      "tpu.region"() ({
        %156 = tpu.sem_alloc : memref<!tpu.dma_semaphore, #tpu.memory_space<semaphore_mem>>
        tpu.enqueue_dma source(%arg4 : memref<32x32xf32, #tpu.memory_space<any>>) target(%arg10 : memref<32x32xf32, #tpu.memory_space<vmem>>) target_semaphore(%156 : memref<!tpu.dma_semaphore, #tpu.memory_space<semaphore_mem>>)
        tpu.wait_dma2 semaphore(%156 : memref<!tpu.dma_semaphore, #tpu.memory_space<semaphore_mem>>) src(%arg4 : memref<32x32xf32, #tpu.memory_space<any>>) dst(%arg10 : memref<32x32xf32, #tpu.memory_space<vmem>>)
        tpu.yield
      }) : () -> ()
      "tpu.region"() ({
        %156 = tpu.sem_alloc : memref<!tpu.dma_semaphore, #tpu.memory_space<semaphore_mem>>
        tpu.enqueue_dma source(%arg5 : memref<1x32xf32, #tpu.memory_space<any>>) target(%arg11 : memref<1x32xf32, #tpu.memory_space<vmem>>) target_semaphore(%156 : memref<!tpu.dma_semaphore, #tpu.memory_space<semaphore_mem>>)
        tpu.wait_dma2 semaphore(%156 : memref<!tpu.dma_semaphore, #tpu.memory_space<semaphore_mem>>) src(%arg5 : memref<1x32xf32, #tpu.memory_space<any>>) dst(%arg11 : memref<1x32xf32, #tpu.memory_space<vmem>>)
        tpu.yield
      }) : () -> ()
      "tpu.region"() ({
        %156 = tpu.sem_alloc : memref<!tpu.dma_semaphore, #tpu.memory_space<semaphore_mem>>
        tpu.enqueue_dma source(%arg6 : memref<32x4xf32, #tpu.memory_space<any>>) target(%arg12 : memref<32x4xf32, #tpu.memory_space<vmem>>) target_semaphore(%156 : memref<!tpu.dma_semaphore, #tpu.memory_space<semaphore_mem>>)
        tpu.wait_dma2 semaphore(%156 : memref<!tpu.dma_semaphore, #tpu.memory_space<semaphore_mem>>) src(%arg6 : memref<32x4xf32, #tpu.memory_space<any>>) dst(%arg12 : memref<32x4xf32, #tpu.memory_space<vmem>>)
        tpu.yield
      }) : () -> ()
      "tpu.region"() ({
        %156 = tpu.sem_alloc : memref<!tpu.dma_semaphore, #tpu.memory_space<semaphore_mem>>
        tpu.enqueue_dma source(%arg7 : memref<1x4xf32, #tpu.memory_space<any>>) target(%arg13 : memref<1x4xf32, #tpu.memory_space<vmem>>) target_semaphore(%156 : memref<!tpu.dma_semaphore, #tpu.memory_space<semaphore_mem>>)
        tpu.wait_dma2 semaphore(%156 : memref<!tpu.dma_semaphore, #tpu.memory_space<semaphore_mem>>) src(%arg7 : memref<1x4xf32, #tpu.memory_space<any>>) dst(%arg13 : memref<1x4xf32, #tpu.memory_space<vmem>>)
        tpu.yield
      }) : () -> ()
    } else {
    }
    %c0 = arith.constant 0 : index
    %c0_1 = arith.constant 0 : index
    %c0_2 = arith.constant 0 : index
    %3 = vector.load %arg2[%c0, %c0_1, %c0_2] : memref<2x16x4xf32, #tpu.memory_space<vmem>>, vector<2x16x4xf32>
    %4 = vector.shape_cast %3 : vector<2x16x4xf32> to vector<32x4xf32>
    %c0_3 = arith.constant 0 : index
    %c0_4 = arith.constant 0 : index
    %5 = vector.load %arg9[%c0_3, %c0_4] : memref<4x32xf32, #tpu.memory_space<vmem>>, vector<4x32xf32>
    %cst = arith.constant dense<0.000000e+00> : vector<32x32xf32>
    %6 = tpu.matmul %4, %5, %cst {dimension_numbers = #tpu.dot_dimension_numbers<[1], [0], [0], [1], [0, 0, 1, 1], [], []>} : vector<32x4xf32>, vector<4x32xf32>, vector<32x32xf32> -> vector<32x32xf32>
    %c0_5 = arith.constant 0 : index
    %c0_6 = arith.constant 0 : index
    %7 = vector.load %arg11[%c0_5, %c0_6] : memref<1x32xf32, #tpu.memory_space<vmem>>, vector<1x32xf32>
    %8 = vector.broadcast %7 : vector<1x32xf32> to vector<32x32xf32>
    %9 = arith.addf %6, %8 : vector<32x32xf32>
    %10 = vector.shape_cast %9 : vector<32x32xf32> to vector<2x16x32xf32>
    %c0_7 = arith.constant 0 : index
    %c0_8 = arith.constant 0 : index
    %c0_9 = arith.constant 0 : index
    %11 = vector.load %arg15[%c0_7, %c0_8, %c0_9] : memref<2x16x32xf32, #tpu.memory_space<vmem>>, vector<2x16x32xf32>
    tpu.vector_store %arg15[%c0_7, %c0_8, %c0_9], %10 {strides = array<i32>} : memref<2x16x32xf32, #tpu.memory_space<vmem>>, vector<2x16x32xf32>,
    %c0_10 = arith.constant 0 : index
    %c0_11 = arith.constant 0 : index
    %12 = vector.load %arg10[%c0_10, %c0_11] : memref<32x32xf32, #tpu.memory_space<vmem>>, vector<32x32xf32>
    %c0_12 = arith.constant 0 : index
    %c0_13 = arith.constant 0 : index
    %13 = vector.load %arg14[%c0_12, %c0_13] : memref<2x32xf32, #tpu.memory_space<vmem>>, vector<2x32xf32>
    %c0_14 = arith.constant 0 : index
    %c0_15 = arith.constant 0 : index
    %c0_16 = arith.constant 0 : index
    %14 = vector.load %arg15[%c0_14, %c0_15, %c0_16] : memref<2x16x32xf32, #tpu.memory_space<vmem>>, vector<2x1x32xf32>
    %15 = vector.shape_cast %14 : vector<2x1x32xf32> to vector<2x32xf32>
    %cst_17 = arith.constant dense<0.000000e+00> : vector<2x32xf32>
    %16 = tpu.matmul %13, %12, %cst_17 {dimension_numbers = #tpu.dot_dimension_numbers<[1], [0], [0], [1], [0, 0, 1, 1], [], []>} : vector<2x32xf32>, vector<32x32xf32>, vector<2x32xf32> -> vector<2x32xf32>
    %17 = arith.addf %15, %16 : vector<2x32xf32>
    %18 = math.tanh %17 : vector<2x32xf32>
    %c0_18 = arith.constant 0 : index
    %c0_19 = arith.constant 0 : index
    %c0_20 = arith.constant 0 : index
    %19 = vector.load %arg15[%c0_18, %c0_19, %c0_20] : memref<2x16x32xf32, #tpu.memory_space<vmem>>, vector<2x1x32xf32>
    %20 = vector.shape_cast %19 : vector<2x1x32xf32> to vector<2x32xf32>
    %21 = vector.shape_cast %18 : vector<2x32xf32> to vector<2x1x32xf32>
    tpu.vector_store %arg15[%c0_18, %c0_19, %c0_20], %21 {strides = array<i32>} : memref<2x16x32xf32, #tpu.memory_space<vmem>>, vector<2x1x32xf32>,
    %c0_21 = arith.constant 0 : index
    %c1 = arith.constant 1 : index
    %c0_22 = arith.constant 0 : index
    %22 = vector.load %arg15[%c0_21, %c1, %c0_22] : memref<2x16x32xf32, #tpu.memory_space<vmem>>, vector<2x1x32xf32>
    %23 = vector.shape_cast %22 : vector<2x1x32xf32> to vector<2x32xf32>
    %cst_23 = arith.constant dense<0.000000e+00> : vector<2x32xf32>
    %24 = tpu.matmul %18, %12, %cst_23 {dimension_numbers = #tpu.dot_dimension_numbers<[1], [0], [0], [1], [0, 0, 1, 1], [], []>} : vector<2x32xf32>, vector<32x32xf32>, vector<2x32xf32> -> vector<2x32xf32>
    %25 = arith.addf %23, %24 : vector<2x32xf32>
    %26 = math.tanh %25 : vector<2x32xf32>
    %c0_24 = arith.constant 0 : index
    %c1_25 = arith.constant 1 : index
    %c0_26 = arith.constant 0 : index
    %27 = vector.load %arg15[%c0_24, %c1_25, %c0_26] : memref<2x16x32xf32, #tpu.memory_space<vmem>>, vector<2x1x32xf32>
    %28 = vector.shape_cast %27 : vector<2x1x32xf32> to vector<2x32xf32>
    %29 = vector.shape_cast %26 : vector<2x32xf32> to vector<2x1x32xf32>
    tpu.vector_store %arg15[%c0_24, %c1_25, %c0_26], %29 {strides = array<i32>} : memref<2x16x32xf32, #tpu.memory_space<vmem>>, vector<2x1x32xf32>,
    %c0_27 = arith.constant 0 : index
    %c2 = arith.constant 2 : index
    %c0_28 = arith.constant 0 : index
    %30 = vector.load %arg15[%c0_27, %c2, %c0_28] : memref<2x16x32xf32, #tpu.memory_space<vmem>>, vector<2x1x32xf32>
    %31 = vector.shape_cast %30 : vector<2x1x32xf32> to vector<2x32xf32>
    %cst_29 = arith.constant dense<0.000000e+00> : vector<2x32xf32>
    %32 = tpu.matmul %26, %12, %cst_29 {dimension_numbers = #tpu.dot_dimension_numbers<[1], [0], [0], [1], [0, 0, 1, 1], [], []>} : vector<2x32xf32>, vector<32x32xf32>, vector<2x32xf32> -> vector<2x32xf32>
    %33 = arith.addf %31, %32 : vector<2x32xf32>
    %34 = math.tanh %33 : vector<2x32xf32>
    %c0_30 = arith.constant 0 : index
    %c2_31 = arith.constant 2 : index
    %c0_32 = arith.constant 0 : index
    %35 = vector.load %arg15[%c0_30, %c2_31, %c0_32] : memref<2x16x32xf32, #tpu.memory_space<vmem>>, vector<2x1x32xf32>
    %36 = vector.shape_cast %35 : vector<2x1x32xf32> to vector<2x32xf32>
    %37 = vector.shape_cast %34 : vector<2x32xf32> to vector<2x1x32xf32>
    tpu.vector_store %arg15[%c0_30, %c2_31, %c0_32], %37 {strides = array<i32>} : memref<2x16x32xf32, #tpu.memory_space<vmem>>, vector<2x1x32xf32>,
    %c0_33 = arith.constant 0 : index
    %c3 = arith.constant 3 : index
    %c0_34 = arith.constant 0 : index
    %38 = vector.load %arg15[%c0_33, %c3, %c0_34] : memref<2x16x32xf32, #tpu.memory_space<vmem>>, vector<2x1x32xf32>
    %39 = vector.shape_cast %38 : vector<2x1x32xf32> to vector<2x32xf32>
    %cst_35 = arith.constant dense<0.000000e+00> : vector<2x32xf32>
    %40 = tpu.matmul %34, %12, %cst_35 {dimension_numbers = #tpu.dot_dimension_numbers<[1], [0], [0], [1], [0, 0, 1, 1], [], []>} : vector<2x32xf32>, vector<32x32xf32>, vector<2x32xf32> -> vector<2x32xf32>
    %41 = arith.addf %39, %40 : vector<2x32xf32>
    %42 = math.tanh %41 : vector<2x32xf32>
    %c0_36 = arith.constant 0 : index
    %c3_37 = arith.constant 3 : index
    %c0_38 = arith.constant 0 : index
    %43 = vector.load %arg15[%c0_36, %c3_37, %c0_38] : memref<2x16x32xf32, #tpu.memory_space<vmem>>, vector<2x1x32xf32>
    %44 = vector.shape_cast %43 : vector<2x1x32xf32> to vector<2x32xf32>
    %45 = vector.shape_cast %42 : vector<2x32xf32> to vector<2x1x32xf32>
    tpu.vector_store %arg15[%c0_36, %c3_37, %c0_38], %45 {strides = array<i32>} : memref<2x16x32xf32, #tpu.memory_space<vmem>>, vector<2x1x32xf32>,
    %c0_39 = arith.constant 0 : index
    %c4 = arith.constant 4 : index
    %c0_40 = arith.constant 0 : index
    %46 = vector.load %arg15[%c0_39, %c4, %c0_40] : memref<2x16x32xf32, #tpu.memory_space<vmem>>, vector<2x1x32xf32>
    %47 = vector.shape_cast %46 : vector<2x1x32xf32> to vector<2x32xf32>
    %cst_41 = arith.constant dense<0.000000e+00> : vector<2x32xf32>
    %48 = tpu.matmul %42, %12, %cst_41 {dimension_numbers = #tpu.dot_dimension_numbers<[1], [0], [0], [1], [0, 0, 1, 1], [], []>} : vector<2x32xf32>, vector<32x32xf32>, vector<2x32xf32> -> vector<2x32xf32>
    %49 = arith.addf %47, %48 : vector<2x32xf32>
    %50 = math.tanh %49 : vector<2x32xf32>
    %c0_42 = arith.constant 0 : index
    %c4_43 = arith.constant 4 : index
    %c0_44 = arith.constant 0 : index
    %51 = vector.load %arg15[%c0_42, %c4_43, %c0_44] : memref<2x16x32xf32, #tpu.memory_space<vmem>>, vector<2x1x32xf32>
    %52 = vector.shape_cast %51 : vector<2x1x32xf32> to vector<2x32xf32>
    %53 = vector.shape_cast %50 : vector<2x32xf32> to vector<2x1x32xf32>
    tpu.vector_store %arg15[%c0_42, %c4_43, %c0_44], %53 {strides = array<i32>} : memref<2x16x32xf32, #tpu.memory_space<vmem>>, vector<2x1x32xf32>,
    %c0_45 = arith.constant 0 : index
    %c5 = arith.constant 5 : index
    %c0_46 = arith.constant 0 : index
    %54 = vector.load %arg15[%c0_45, %c5, %c0_46] : memref<2x16x32xf32, #tpu.memory_space<vmem>>, vector<2x1x32xf32>
    %55 = vector.shape_cast %54 : vector<2x1x32xf32> to vector<2x32xf32>
    %cst_47 = arith.constant dense<0.000000e+00> : vector<2x32xf32>
    %56 = tpu.matmul %50, %12, %cst_47 {dimension_numbers = #tpu.dot_dimension_numbers<[1], [0], [0], [1], [0, 0, 1, 1], [], []>} : vector<2x32xf32>, vector<32x32xf32>, vector<2x32xf32> -> vector<2x32xf32>
    %57 = arith.addf %55, %56 : vector<2x32xf32>
    %58 = math.tanh %57 : vector<2x32xf32>
    %c0_48 = arith.constant 0 : index
    %c5_49 = arith.constant 5 : index
    %c0_50 = arith.constant 0 : index
    %59 = vector.load %arg15[%c0_48, %c5_49, %c0_50] : memref<2x16x32xf32, #tpu.memory_space<vmem>>, vector<2x1x32xf32>
    %60 = vector.shape_cast %59 : vector<2x1x32xf32> to vector<2x32xf32>
    %61 = vector.shape_cast %58 : vector<2x32xf32> to vector<2x1x32xf32>
    tpu.vector_store %arg15[%c0_48, %c5_49, %c0_50], %61 {strides = array<i32>} : memref<2x16x32xf32, #tpu.memory_space<vmem>>, vector<2x1x32xf32>,
    %c0_51 = arith.constant 0 : index
    %c6 = arith.constant 6 : index
    %c0_52 = arith.constant 0 : index
    %62 = vector.load %arg15[%c0_51, %c6, %c0_52] : memref<2x16x32xf32, #tpu.memory_space<vmem>>, vector<2x1x32xf32>
    %63 = vector.shape_cast %62 : vector<2x1x32xf32> to vector<2x32xf32>
    %cst_53 = arith.constant dense<0.000000e+00> : vector<2x32xf32>
    %64 = tpu.matmul %58, %12, %cst_53 {dimension_numbers = #tpu.dot_dimension_numbers<[1], [0], [0], [1], [0, 0, 1, 1], [], []>} : vector<2x32xf32>, vector<32x32xf32>, vector<2x32xf32> -> vector<2x32xf32>
    %65 = arith.addf %63, %64 : vector<2x32xf32>
    %66 = math.tanh %65 : vector<2x32xf32>
    %c0_54 = arith.constant 0 : index
    %c6_55 = arith.constant 6 : index
    %c0_56 = arith.constant 0 : index
    %67 = vector.load %arg15[%c0_54, %c6_55, %c0_56] : memref<2x16x32xf32, #tpu.memory_space<vmem>>, vector<2x1x32xf32>
    %68 = vector.shape_cast %67 : vector<2x1x32xf32> to vector<2x32xf32>
    %69 = vector.shape_cast %66 : vector<2x32xf32> to vector<2x1x32xf32>
    tpu.vector_store %arg15[%c0_54, %c6_55, %c0_56], %69 {strides = array<i32>} : memref<2x16x32xf32, #tpu.memory_space<vmem>>, vector<2x1x32xf32>,
    %c0_57 = arith.constant 0 : index
    %c7 = arith.constant 7 : index
    %c0_58 = arith.constant 0 : index
    %70 = vector.load %arg15[%c0_57, %c7, %c0_58] : memref<2x16x32xf32, #tpu.memory_space<vmem>>, vector<2x1x32xf32>
    %71 = vector.shape_cast %70 : vector<2x1x32xf32> to vector<2x32xf32>
    %cst_59 = arith.constant dense<0.000000e+00> : vector<2x32xf32>
    %72 = tpu.matmul %66, %12, %cst_59 {dimension_numbers = #tpu.dot_dimension_numbers<[1], [0], [0], [1], [0, 0, 1, 1], [], []>} : vector<2x32xf32>, vector<32x32xf32>, vector<2x32xf32> -> vector<2x32xf32>
    %73 = arith.addf %71, %72 : vector<2x32xf32>
    %74 = math.tanh %73 : vector<2x32xf32>
    %c0_60 = arith.constant 0 : index
    %c7_61 = arith.constant 7 : index
    %c0_62 = arith.constant 0 : index
    %75 = vector.load %arg15[%c0_60, %c7_61, %c0_62] : memref<2x16x32xf32, #tpu.memory_space<vmem>>, vector<2x1x32xf32>
    %76 = vector.shape_cast %75 : vector<2x1x32xf32> to vector<2x32xf32>
    %77 = vector.shape_cast %74 : vector<2x32xf32> to vector<2x1x32xf32>
    tpu.vector_store %arg15[%c0_60, %c7_61, %c0_62], %77 {strides = array<i32>} : memref<2x16x32xf32, #tpu.memory_space<vmem>>, vector<2x1x32xf32>,
    %c0_63 = arith.constant 0 : index
    %c8 = arith.constant 8 : index
    %c0_64 = arith.constant 0 : index
    %78 = vector.load %arg15[%c0_63, %c8, %c0_64] : memref<2x16x32xf32, #tpu.memory_space<vmem>>, vector<2x1x32xf32>
    %79 = vector.shape_cast %78 : vector<2x1x32xf32> to vector<2x32xf32>
    %cst_65 = arith.constant dense<0.000000e+00> : vector<2x32xf32>
    %80 = tpu.matmul %74, %12, %cst_65 {dimension_numbers = #tpu.dot_dimension_numbers<[1], [0], [0], [1], [0, 0, 1, 1], [], []>} : vector<2x32xf32>, vector<32x32xf32>, vector<2x32xf32> -> vector<2x32xf32>
    %81 = arith.addf %79, %80 : vector<2x32xf32>
    %82 = math.tanh %81 : vector<2x32xf32>
    %c0_66 = arith.constant 0 : index
    %c8_67 = arith.constant 8 : index
    %c0_68 = arith.constant 0 : index
    %83 = vector.load %arg15[%c0_66, %c8_67, %c0_68] : memref<2x16x32xf32, #tpu.memory_space<vmem>>, vector<2x1x32xf32>
    %84 = vector.shape_cast %83 : vector<2x1x32xf32> to vector<2x32xf32>
    %85 = vector.shape_cast %82 : vector<2x32xf32> to vector<2x1x32xf32>
    tpu.vector_store %arg15[%c0_66, %c8_67, %c0_68], %85 {strides = array<i32>} : memref<2x16x32xf32, #tpu.memory_space<vmem>>, vector<2x1x32xf32>,
    %c0_69 = arith.constant 0 : index
    %c9 = arith.constant 9 : index
    %c0_70 = arith.constant 0 : index
    %86 = vector.load %arg15[%c0_69, %c9, %c0_70] : memref<2x16x32xf32, #tpu.memory_space<vmem>>, vector<2x1x32xf32>
    %87 = vector.shape_cast %86 : vector<2x1x32xf32> to vector<2x32xf32>
    %cst_71 = arith.constant dense<0.000000e+00> : vector<2x32xf32>
    %88 = tpu.matmul %82, %12, %cst_71 {dimension_numbers = #tpu.dot_dimension_numbers<[1], [0], [0], [1], [0, 0, 1, 1], [], []>} : vector<2x32xf32>, vector<32x32xf32>, vector<2x32xf32> -> vector<2x32xf32>
    %89 = arith.addf %87, %88 : vector<2x32xf32>
    %90 = math.tanh %89 : vector<2x32xf32>
    %c0_72 = arith.constant 0 : index
    %c9_73 = arith.constant 9 : index
    %c0_74 = arith.constant 0 : index
    %91 = vector.load %arg15[%c0_72, %c9_73, %c0_74] : memref<2x16x32xf32, #tpu.memory_space<vmem>>, vector<2x1x32xf32>
    %92 = vector.shape_cast %91 : vector<2x1x32xf32> to vector<2x32xf32>
    %93 = vector.shape_cast %90 : vector<2x32xf32> to vector<2x1x32xf32>
    tpu.vector_store %arg15[%c0_72, %c9_73, %c0_74], %93 {strides = array<i32>} : memref<2x16x32xf32, #tpu.memory_space<vmem>>, vector<2x1x32xf32>,
    %c0_75 = arith.constant 0 : index
    %c10 = arith.constant 10 : index
    %c0_76 = arith.constant 0 : index
    %94 = vector.load %arg15[%c0_75, %c10, %c0_76] : memref<2x16x32xf32, #tpu.memory_space<vmem>>, vector<2x1x32xf32>
    %95 = vector.shape_cast %94 : vector<2x1x32xf32> to vector<2x32xf32>
    %cst_77 = arith.constant dense<0.000000e+00> : vector<2x32xf32>
    %96 = tpu.matmul %90, %12, %cst_77 {dimension_numbers = #tpu.dot_dimension_numbers<[1], [0], [0], [1], [0, 0, 1, 1], [], []>} : vector<2x32xf32>, vector<32x32xf32>, vector<2x32xf32> -> vector<2x32xf32>
    %97 = arith.addf %95, %96 : vector<2x32xf32>
    %98 = math.tanh %97 : vector<2x32xf32>
    %c0_78 = arith.constant 0 : index
    %c10_79 = arith.constant 10 : index
    %c0_80 = arith.constant 0 : index
    %99 = vector.load %arg15[%c0_78, %c10_79, %c0_80] : memref<2x16x32xf32, #tpu.memory_space<vmem>>, vector<2x1x32xf32>
    %100 = vector.shape_cast %99 : vector<2x1x32xf32> to vector<2x32xf32>
    %101 = vector.shape_cast %98 : vector<2x32xf32> to vector<2x1x32xf32>
    tpu.vector_store %arg15[%c0_78, %c10_79, %c0_80], %101 {strides = array<i32>} : memref<2x16x32xf32, #tpu.memory_space<vmem>>, vector<2x1x32xf32>,
    %c0_81 = arith.constant 0 : index
    %c11 = arith.constant 11 : index
    %c0_82 = arith.constant 0 : index
    %102 = vector.load %arg15[%c0_81, %c11, %c0_82] : memref<2x16x32xf32, #tpu.memory_space<vmem>>, vector<2x1x32xf32>
    %103 = vector.shape_cast %102 : vector<2x1x32xf32> to vector<2x32xf32>
    %cst_83 = arith.constant dense<0.000000e+00> : vector<2x32xf32>
    %104 = tpu.matmul %98, %12, %cst_83 {dimension_numbers = #tpu.dot_dimension_numbers<[1], [0], [0], [1], [0, 0, 1, 1], [], []>} : vector<2x32xf32>, vector<32x32xf32>, vector<2x32xf32> -> vector<2x32xf32>
    %105 = arith.addf %103, %104 : vector<2x32xf32>
    %106 = math.tanh %105 : vector<2x32xf32>
    %c0_84 = arith.constant 0 : index
    %c11_85 = arith.constant 11 : index
    %c0_86 = arith.constant 0 : index
    %107 = vector.load %arg15[%c0_84, %c11_85, %c0_86] : memref<2x16x32xf32, #tpu.memory_space<vmem>>, vector<2x1x32xf32>
    %108 = vector.shape_cast %107 : vector<2x1x32xf32> to vector<2x32xf32>
    %109 = vector.shape_cast %106 : vector<2x32xf32> to vector<2x1x32xf32>
    tpu.vector_store %arg15[%c0_84, %c11_85, %c0_86], %109 {strides = array<i32>} : memref<2x16x32xf32, #tpu.memory_space<vmem>>, vector<2x1x32xf32>,
    %c0_87 = arith.constant 0 : index
    %c12 = arith.constant 12 : index
    %c0_88 = arith.constant 0 : index
    %110 = vector.load %arg15[%c0_87, %c12, %c0_88] : memref<2x16x32xf32, #tpu.memory_space<vmem>>, vector<2x1x32xf32>
    %111 = vector.shape_cast %110 : vector<2x1x32xf32> to vector<2x32xf32>
    %cst_89 = arith.constant dense<0.000000e+00> : vector<2x32xf32>
    %112 = tpu.matmul %106, %12, %cst_89 {dimension_numbers = #tpu.dot_dimension_numbers<[1], [0], [0], [1], [0, 0, 1, 1], [], []>} : vector<2x32xf32>, vector<32x32xf32>, vector<2x32xf32> -> vector<2x32xf32>
    %113 = arith.addf %111, %112 : vector<2x32xf32>
    %114 = math.tanh %113 : vector<2x32xf32>
    %c0_90 = arith.constant 0 : index
    %c12_91 = arith.constant 12 : index
    %c0_92 = arith.constant 0 : index
    %115 = vector.load %arg15[%c0_90, %c12_91, %c0_92] : memref<2x16x32xf32, #tpu.memory_space<vmem>>, vector<2x1x32xf32>
    %116 = vector.shape_cast %115 : vector<2x1x32xf32> to vector<2x32xf32>
    %117 = vector.shape_cast %114 : vector<2x32xf32> to vector<2x1x32xf32>
    tpu.vector_store %arg15[%c0_90, %c12_91, %c0_92], %117 {strides = array<i32>} : memref<2x16x32xf32, #tpu.memory_space<vmem>>, vector<2x1x32xf32>,
    %c0_93 = arith.constant 0 : index
    %c13 = arith.constant 13 : index
    %c0_94 = arith.constant 0 : index
    %118 = vector.load %arg15[%c0_93, %c13, %c0_94] : memref<2x16x32xf32, #tpu.memory_space<vmem>>, vector<2x1x32xf32>
    %119 = vector.shape_cast %118 : vector<2x1x32xf32> to vector<2x32xf32>
    %cst_95 = arith.constant dense<0.000000e+00> : vector<2x32xf32>
    %120 = tpu.matmul %114, %12, %cst_95 {dimension_numbers = #tpu.dot_dimension_numbers<[1], [0], [0], [1], [0, 0, 1, 1], [], []>} : vector<2x32xf32>, vector<32x32xf32>, vector<2x32xf32> -> vector<2x32xf32>
    %121 = arith.addf %119, %120 : vector<2x32xf32>
    %122 = math.tanh %121 : vector<2x32xf32>
    %c0_96 = arith.constant 0 : index
    %c13_97 = arith.constant 13 : index
    %c0_98 = arith.constant 0 : index
    %123 = vector.load %arg15[%c0_96, %c13_97, %c0_98] : memref<2x16x32xf32, #tpu.memory_space<vmem>>, vector<2x1x32xf32>
    %124 = vector.shape_cast %123 : vector<2x1x32xf32> to vector<2x32xf32>
    %125 = vector.shape_cast %122 : vector<2x32xf32> to vector<2x1x32xf32>
    tpu.vector_store %arg15[%c0_96, %c13_97, %c0_98], %125 {strides = array<i32>} : memref<2x16x32xf32, #tpu.memory_space<vmem>>, vector<2x1x32xf32>,
    %c0_99 = arith.constant 0 : index
    %c14 = arith.constant 14 : index
    %c0_100 = arith.constant 0 : index
    %126 = vector.load %arg15[%c0_99, %c14, %c0_100] : memref<2x16x32xf32, #tpu.memory_space<vmem>>, vector<2x1x32xf32>
    %127 = vector.shape_cast %126 : vector<2x1x32xf32> to vector<2x32xf32>
    %cst_101 = arith.constant dense<0.000000e+00> : vector<2x32xf32>
    %128 = tpu.matmul %122, %12, %cst_101 {dimension_numbers = #tpu.dot_dimension_numbers<[1], [0], [0], [1], [0, 0, 1, 1], [], []>} : vector<2x32xf32>, vector<32x32xf32>, vector<2x32xf32> -> vector<2x32xf32>
    %129 = arith.addf %127, %128 : vector<2x32xf32>
    %130 = math.tanh %129 : vector<2x32xf32>
    %c0_102 = arith.constant 0 : index
    %c14_103 = arith.constant 14 : index
    %c0_104 = arith.constant 0 : index
    %131 = vector.load %arg15[%c0_102, %c14_103, %c0_104] : memref<2x16x32xf32, #tpu.memory_space<vmem>>, vector<2x1x32xf32>
    %132 = vector.shape_cast %131 : vector<2x1x32xf32> to vector<2x32xf32>
    %133 = vector.shape_cast %130 : vector<2x32xf32> to vector<2x1x32xf32>
    tpu.vector_store %arg15[%c0_102, %c14_103, %c0_104], %133 {strides = array<i32>} : memref<2x16x32xf32, #tpu.memory_space<vmem>>, vector<2x1x32xf32>,
    %c0_105 = arith.constant 0 : index
    %c15 = arith.constant 15 : index
    %c0_106 = arith.constant 0 : index
    %134 = vector.load %arg15[%c0_105, %c15, %c0_106] : memref<2x16x32xf32, #tpu.memory_space<vmem>>, vector<2x1x32xf32>
    %135 = vector.shape_cast %134 : vector<2x1x32xf32> to vector<2x32xf32>
    %cst_107 = arith.constant dense<0.000000e+00> : vector<2x32xf32>
    %136 = tpu.matmul %130, %12, %cst_107 {dimension_numbers = #tpu.dot_dimension_numbers<[1], [0], [0], [1], [0, 0, 1, 1], [], []>} : vector<2x32xf32>, vector<32x32xf32>, vector<2x32xf32> -> vector<2x32xf32>
    %137 = arith.addf %135, %136 : vector<2x32xf32>
    %138 = math.tanh %137 : vector<2x32xf32>
    %c0_108 = arith.constant 0 : index
    %c15_109 = arith.constant 15 : index
    %c0_110 = arith.constant 0 : index
    %139 = vector.load %arg15[%c0_108, %c15_109, %c0_110] : memref<2x16x32xf32, #tpu.memory_space<vmem>>, vector<2x1x32xf32>
    %140 = vector.shape_cast %139 : vector<2x1x32xf32> to vector<2x32xf32>
    %141 = vector.shape_cast %138 : vector<2x32xf32> to vector<2x1x32xf32>
    tpu.vector_store %arg15[%c0_108, %c15_109, %c0_110], %141 {strides = array<i32>} : memref<2x16x32xf32, #tpu.memory_space<vmem>>, vector<2x1x32xf32>,
    %c0_111 = arith.constant 0 : index
    %c0_112 = arith.constant 0 : index
    %142 = vector.load %arg14[%c0_111, %c0_112] : memref<2x32xf32, #tpu.memory_space<vmem>>, vector<2x32xf32>
    tpu.vector_store %arg14[%c0_111, %c0_112], %138 {strides = array<i32>} : memref<2x32xf32, #tpu.memory_space<vmem>>, vector<2x32xf32>,
    %c0_113 = arith.constant 0 : index
    %c0_114 = arith.constant 0 : index
    %c0_115 = arith.constant 0 : index
    %143 = vector.load %arg15[%c0_113, %c0_114, %c0_115] : memref<2x16x32xf32, #tpu.memory_space<vmem>>, vector<2x16x32xf32>
    %144 = vector.shape_cast %143 : vector<2x16x32xf32> to vector<32x32xf32>
    %c0_116 = arith.constant 0 : index
    %c0_117 = arith.constant 0 : index
    %145 = vector.load %arg12[%c0_116, %c0_117] : memref<32x4xf32, #tpu.memory_space<vmem>>, vector<32x4xf32>
    %cst_118 = arith.constant dense<0.000000e+00> : vector<32x4xf32>
    %146 = tpu.matmul %144, %145, %cst_118 {dimension_numbers = #tpu.dot_dimension_numbers<[1], [0], [0], [1], [0, 0, 1, 1], [], []>} : vector<32x32xf32>, vector<32x4xf32>, vector<32x4xf32> -> vector<32x4xf32>
    %c0_119 = arith.constant 0 : index
    %c0_120 = arith.constant 0 : index
    %147 = vector.load %arg13[%c0_119, %c0_120] : memref<1x4xf32, #tpu.memory_space<vmem>>, vector<1x4xf32>
    %148 = vector.broadcast %147 : vector<1x4xf32> to vector<32x4xf32>
    %149 = arith.addf %146, %148 : vector<32x4xf32>
    %cst_121 = arith.constant 0.000000e+00 : f32
    %150 = vector.broadcast %cst_121 : f32 to vector<32x4xf32>
    %151 = arith.maximumf %149, %150 : vector<32x4xf32>
    %152 = vector.shape_cast %151 : vector<32x4xf32> to vector<2x16x4xf32>
    %c0_122 = arith.constant 0 : index
    %c0_123 = arith.constant 0 : index
    %c0_124 = arith.constant 0 : index
    %153 = vector.load %arg8[%c0_122, %c0_123, %c0_124] : memref<2x16x4xf32, #tpu.memory_space<vmem>>, vector<2x16x4xf32>
    tpu.vector_store %arg8[%c0_122, %c0_123, %c0_124], %152 {strides = array<i32>} : memref<2x16x4xf32, #tpu.memory_space<vmem>>, vector<2x16x4xf32>,
    return
  }
  func.func @transform_0(%arg0: i32, %arg1: i32) -> (i32, i32, i32) {
    %c0_i32 = arith.constant 0 : i32
    %c0_i32_0 = arith.constant 0 : i32
    return %arg0, %arg1, %c0_i32 : i32, i32, i32
  }
  func.func @transform_6(%arg0: i32, %arg1: i32) -> (i32, i32, i32) {
    %c0_i32 = arith.constant 0 : i32
    %c0_i32_0 = arith.constant 0 : i32
    return %arg0, %arg1, %c0_i32 : i32, i32, i32
  }
}

</mosaic_0001>

<llo_original>
// kernel: tpu_custom_call.1
$region0: #{tpu_custom_call.1}
  #allocation0 [shape = 'u32[]', space=smem, size = 0x4, offset = 0x4, fixed_abs, tag = 'smem constant byte address 0x4 - core index']
  #allocation1 [shape = 'u32[144,128]{1,0:T(1,128)}', space=vmem, size = 0x12000, scoped, tag = 'internal scratch']
  #allocation2 [shape = 'f32[4,32]{1,0:T(4,128)}', space=vmem, size = 0x800, scoped, tag = 'scratch operand']
  #allocation3 [shape = 'f32[32,32]{1,0:T(8,128)}', space=vmem, size = 0x4000, scoped, tag = 'scratch operand']
  #allocation4 [shape = 'f32[1,32]{1,0:T(1,128)}', space=vmem, size = 0x200, scoped, tag = 'scratch operand']
  #allocation5 [shape = 'f32[32,4]{1,0:T(8,128)}', space=vmem, size = 0x4000, scoped, tag = 'scratch operand']
  #allocation6 [shape = 'f32[1,4]{1,0:T(1,128)}', space=vmem, size = 0x200, scoped, tag = 'scratch operand']
  #allocation7 [shape = 'f32[2,32]{1,0:T(2,128)}', space=vmem, size = 0x400, scoped, tag = 'scratch operand']
  #allocation8 [shape = 'f32[2,16,32]{2,1,0:T(8,128)}', space=vmem, size = 0x4000, scoped, tag = 'scratch operand']
  #allocation10 [shape = 's32[]', space=sflag, size = 0x4, offset = 0, fixed_abs, tag = 'sflag constant byte address 0x0 - dummy sync flag']
  #allocation12 [shape = 's32[]', space=sflag, size = 0x4, offset = 0, fixed_abs, tag = 'sflag constant byte address 0x0 - dummy sync flag']
  #allocation14 [shape = 's32[]', space=sflag, size = 0x4, offset = 0, fixed_abs, tag = 'sflag constant byte address 0x0 - dummy sync flag']
  #allocation16 [shape = 's32[]', space=sflag, size = 0x4, offset = 0, fixed_abs, tag = 'sflag constant byte address 0x0 - dummy sync flag']
  #allocation18 [shape = 's32[]', space=sflag, size = 0x4, offset = 0, fixed_abs, tag = 'sflag constant byte address 0x0 - dummy sync flag']
  %s0 = inlined_call_operand.vmem [shape: f32[2,16,4], index: 0, kind: input, shape index: {}]
  %s1 = inlined_call_operand.vmem [shape: f32[4,32], index: 1, kind: input, shape index: {}]
  %s2 = inlined_call_operand.vmem [shape: f32[32,32], index: 2, kind: input, shape index: {}]
  %s3 = inlined_call_operand.vmem [shape: f32[1,32], index: 3, kind: input, shape index: {}]
  %s4 = inlined_call_operand.vmem [shape: f32[32,4], index: 4, kind: input, shape index: {}]
  %s5 = inlined_call_operand.vmem [shape: f32[1,4], index: 5, kind: input, shape index: {}]
  %s6 = inlined_call_operand.vmem [shape: f32[2,16,4], index: 6, kind: output, shape index: {}]
  %s7 = sld [smem:[#allocation0]]
  $region181: #{tpu_custom_call.1} parent=0
    _
  %s9 = ssub.s32 1, %s7
  %s10 = scalar_select 0, %s9, %s7
  // Predicated region
  $region2: #{tpu_custom_call.1} parent=0 // pred_check
    _
  $region3: #{tpu_custom_call.1} parent=0 // pred_check_branch
    %12 = sbr.rel (0) target = $region5
  $region4: #{tpu_custom_call.1} parent=0 // pred_region
    _
  $region5: #{tpu_custom_call.1} parent=0 // pred_fallthru
    _
  %p13 = scmp.eq.s32.totalorder 0, 0
  // Predicated region
  $region6: #{tpu_custom_call.1} parent=0 // pred_check
    %p14 = pneg %p13
  $region7: #{tpu_custom_call.1} parent=0 // pred_check_branch
    %16 = sbr.rel (%p14) target = $region9
  $region8: #{tpu_custom_call.1} parent=0 // pred_region
    %vm17 = vcmask 254976
    %18 = vst.msk [vmem:[#allocation7] sm:$0x3] %vm17, 0.0
    $region10: #{tpu_custom_call.1} parent=8
      #allocation9 [shape = 's32[1]{0}', space=sflag, size = 0x4, scoped, tag = 'scoped memory for tpu_custom_call.1']
      %p20 = scmp.lt.u32.totalorder 4, 8
      %p21 = pneg %p20
      // Predicated region
      $region11: #{tpu_custom_call.1} parent=10 // pred_check
        _
      $region12: #{tpu_custom_call.1} parent=10 // pred_check_branch
        %23 = sbr.rel (%p20) target = $region14
      $region13: #{tpu_custom_call.1} parent=10 // pred_region
        %s38 = sand.u32 4, 7
        %p39 = scmp.eq.s32.totalorder %s38, 0
        %p40 = pneg %p39
        // Predicated region
        $region26: #{tpu_custom_call.1} parent=13 // pred_check
          _
        $region27: #{tpu_custom_call.1} parent=13 // pred_check_branch
          %42 = sbr.rel (%p39) target = $region29
        $region28: #{tpu_custom_call.1} parent=13 // pred_region
          %s43 = sand.u32 4, 7
          %s44 = ssub.s32 4, %s43
          %s45 = scalar_lea.vmem %s1, %s44
          %s46 = ssub.s32 4, %s43
          %s47 = scalar_lea.vmem [#allocation2], %s46
          %s48 = sshllo.u32 0, %s43
          loop: start=0, step=1, limit=1
          $region30: #{tpu_custom_call.1} parent=28 // loop_pre_header
            _
          $region31: #{tpu_custom_call.1} parent=28 // loop_header
            %s50 = sphi 0, %s54
            %p51 = scmp.ge.s32.totalorder %s50, 1
            %s55 = sphi %s45, %s45
            %s56 = sphi %s47, %s47
          $region32: #{tpu_custom_call.1} parent=28 // loop_header_branch
            %53 = sbr.rel (%p51) target = $region36
          $region33: #{tpu_custom_call.1} parent=28 // loop_body
            %v57 = vld [vmem:[%s55] sm:%s48]
            %58 = vst [vmem:[%s56] sm:%s48] %v57
          $region34: #{tpu_custom_call.1} parent=28 // loop_footer
            %s54 = sadd.s32 1, %s50
          $region35: #{tpu_custom_call.1} parent=28 // loop_footer_branch
            %49 = sbr.rel target = $region31
          $region36: #{tpu_custom_call.1} parent=28 // loop_exit
            _
        $region29: #{tpu_custom_call.1} parent=13 // pred_fallthru
          _
      $region14: #{tpu_custom_call.1} parent=10 // pred_fallthru
        _
      // Predicated region
      $region15: #{tpu_custom_call.1} parent=10 // pred_check
        %p24 = pneg %p20
      $region16: #{tpu_custom_call.1} parent=10 // pred_check_branch
        %26 = sbr.rel (%p24) target = $region18
      $region17: #{tpu_custom_call.1} parent=10 // pred_region
        %s27 = sshllo.u32 0, 4
        loop: start=0, step=1, limit=1
        $region19: #{tpu_custom_call.1} parent=17 // loop_pre_header
          _
        $region20: #{tpu_custom_call.1} parent=17 // loop_header
          %s29 = sphi 0, %s33
          %p30 = scmp.ge.s32.totalorder %s29, 1
          %s34 = sphi %s1, %s1
          %s35 = sphi [#allocation2], [#allocation2]
        $region21: #{tpu_custom_call.1} parent=17 // loop_header_branch
          %32 = sbr.rel (%p30) target = $region25
        $region22: #{tpu_custom_call.1} parent=17 // loop_body
          %v36 = vld [vmem:[%s34] sm:%s27]
          %37 = vst [vmem:[%s35] sm:%s27] %v36
        $region23: #{tpu_custom_call.1} parent=17 // loop_footer
          %s33 = sadd.s32 1, %s29
        $region24: #{tpu_custom_call.1} parent=17 // loop_footer_branch
          %28 = sbr.rel target = $region20
        $region25: #{tpu_custom_call.1} parent=17 // loop_exit
          _
      $region18: #{tpu_custom_call.1} parent=10 // pred_fallthru
        _
      // Predicated region
      $region37: #{tpu_custom_call.1} parent=10 // pred_check
        _
      $region38: #{tpu_custom_call.1} parent=10 // pred_check_branch
        %61 = sbr.rel (0) target = $region40
      $region39: #{tpu_custom_call.1} parent=10 // pred_region
        %62 = vsyncadd [#allocation9], 64
      $region40: #{tpu_custom_call.1} parent=10 // pred_fallthru
        _
      %s63 = smul.u32 4, 1
      %s64 = sshll.u32 %s63, 4
      %65 = dma.done [#allocation9], %s64
    $region41: #{tpu_custom_call.1} parent=8
      #allocation11 [shape = 's32[1]{0}', space=sflag, size = 0x4, scoped, tag = 'scoped memory for tpu_custom_call.1']
      %p67 = scmp.lt.u32.totalorder 32, 8
      %p68 = pneg %p67
      // Predicated region
      $region42: #{tpu_custom_call.1} parent=41 // pred_check
        _
      $region43: #{tpu_custom_call.1} parent=41 // pred_check_branch
        %70 = sbr.rel (%p67) target = $region45
      $region44: #{tpu_custom_call.1} parent=41 // pred_region
        %s85 = sand.u32 32, 7
        %p86 = scmp.eq.s32.totalorder %s85, 0
        // Predicated region
        $region57: #{tpu_custom_call.1} parent=44 // pred_check
          %p87 = pneg %p86
        $region58: #{tpu_custom_call.1} parent=44 // pred_check_branch
          %89 = sbr.rel (%p87) target = $region60
        $region59: #{tpu_custom_call.1} parent=44 // pred_region
          loop: start=0, step=1, limit=1
          $region61: #{tpu_custom_call.1} parent=59 // loop_pre_header
            _
          $region62: #{tpu_custom_call.1} parent=59 // loop_header
            %s91 = sphi 0, %s95
            %p92 = scmp.ge.s32.totalorder %s91, 1
            %s96 = sphi %s2, %s2
            %s97 = sphi [#allocation3], [#allocation3]
          $region63: #{tpu_custom_call.1} parent=59 // loop_header_branch
            %94 = sbr.rel (%p92) target = $region67
          $region64: #{tpu_custom_call.1} parent=59 // loop_body
            %v98 = vld [vmem:[%s96] sm:$0xff]
            %99 = vst [vmem:[%s97] sm:$0xff] %v98
            %v100 = vld [vmem:[%s96 + $0x8] sm:$0xff]
            %101 = vst [vmem:[%s97 + $0x8] sm:$0xff] %v100
            %v102 = vld [vmem:[%s96 + $0x10] sm:$0xff]
            %103 = vst [vmem:[%s97 + $0x10] sm:$0xff] %v102
            %v104 = vld [vmem:[%s96 + $0x18] sm:$0xff]
            %105 = vst [vmem:[%s97 + $0x18] sm:$0xff] %v104
          $region65: #{tpu_custom_call.1} parent=59 // loop_footer
            %s95 = sadd.s32 1, %s91
          $region66: #{tpu_custom_call.1} parent=59 // loop_footer_branch
            %90 = sbr.rel target = $region62
          $region67: #{tpu_custom_call.1} parent=59 // loop_exit
            _
        $region60: #{tpu_custom_call.1} parent=44 // pred_fallthru
          _
        %p106 = pneg %p86
        // Predicated region
        $region68: #{tpu_custom_call.1} parent=44 // pred_check
          _
        $region69: #{tpu_custom_call.1} parent=44 // pred_check_branch
          %108 = sbr.rel (%p86) target = $region71
        $region70: #{tpu_custom_call.1} parent=44 // pred_region
          %s109 = sand.u32 32, 7
        $region71: #{tpu_custom_call.1} parent=44 // pred_fallthru
          _
      $region45: #{tpu_custom_call.1} parent=41 // pred_fallthru
        _
      // Predicated region
      $region46: #{tpu_custom_call.1} parent=41 // pred_check
        %p71 = pneg %p67
      $region47: #{tpu_custom_call.1} parent=41 // pred_check_branch
        %73 = sbr.rel (%p71) target = $region49
      $region48: #{tpu_custom_call.1} parent=41 // pred_region
        %s74 = sshllo.u32 0, 32
        loop: start=0, step=1, limit=1
        $region50: #{tpu_custom_call.1} parent=48 // loop_pre_header
          _
        $region51: #{tpu_custom_call.1} parent=48 // loop_header
          %s76 = sphi 0, %s80
          %p77 = scmp.ge.s32.totalorder %s76, 1
          %s81 = sphi %s2, %s2
          %s82 = sphi [#allocation3], [#allocation3]
        $region52: #{tpu_custom_call.1} parent=48 // loop_header_branch
          %79 = sbr.rel (%p77) target = $region56
        $region53: #{tpu_custom_call.1} parent=48 // loop_body
          %v83 = vld [vmem:[%s81] sm:%s74]
          %84 = vst [vmem:[%s82] sm:%s74] %v83
        $region54: #{tpu_custom_call.1} parent=48 // loop_footer
          %s80 = sadd.s32 1, %s76
        $region55: #{tpu_custom_call.1} parent=48 // loop_footer_branch
          %75 = sbr.rel target = $region51
        $region56: #{tpu_custom_call.1} parent=48 // loop_exit
          _
      $region49: #{tpu_custom_call.1} parent=41 // pred_fallthru
        _
      // Predicated region
      $region72: #{tpu_custom_call.1} parent=41 // pred_check
        _
      $region73: #{tpu_custom_call.1} parent=41 // pred_check_branch
        %112 = sbr.rel (0) target = $region75
      $region74: #{tpu_custom_call.1} parent=41 // pred_region
        %113 = vsyncadd [#allocation11], 512
      $region75: #{tpu_custom_call.1} parent=41 // pred_fallthru
        _
      %s114 = smul.u32 32, 1
      %s115 = sshll.u32 %s114, 4
      %116 = dma.done [#allocation11], %s115
    $region76: #{tpu_custom_call.1} parent=8
      #allocation13 [shape = 's32[1]{0}', space=sflag, size = 0x4, scoped, tag = 'scoped memory for tpu_custom_call.1']
      %p118 = scmp.lt.u32.totalorder 1, 8
      %p119 = pneg %p118
      // Predicated region
      $region77: #{tpu_custom_call.1} parent=76 // pred_check
        _
      $region78: #{tpu_custom_call.1} parent=76 // pred_check_branch
        %121 = sbr.rel (%p118) target = $region80
      $region79: #{tpu_custom_call.1} parent=76 // pred_region
        %s136 = sand.u32 1, 7
        %p137 = scmp.eq.s32.totalorder %s136, 0
        %p138 = pneg %p137
        // Predicated region
        $region92: #{tpu_custom_call.1} parent=79 // pred_check
          _
        $region93: #{tpu_custom_call.1} parent=79 // pred_check_branch
          %140 = sbr.rel (%p137) target = $region95
        $region94: #{tpu_custom_call.1} parent=79 // pred_region
          %s141 = sand.u32 1, 7
          %s142 = ssub.s32 1, %s141
          %s143 = scalar_lea.vmem %s3, %s142
          %s144 = ssub.s32 1, %s141
          %s145 = scalar_lea.vmem [#allocation4], %s144
          %s146 = sshllo.u32 0, %s141
          loop: start=0, step=1, limit=1
          $region96: #{tpu_custom_call.1} parent=94 // loop_pre_header
            _
          $region97: #{tpu_custom_call.1} parent=94 // loop_header
            %s148 = sphi 0, %s152
            %p149 = scmp.ge.s32.totalorder %s148, 1
            %s153 = sphi %s143, %s143
            %s154 = sphi %s145, %s145
          $region98: #{tpu_custom_call.1} parent=94 // loop_header_branch
            %151 = sbr.rel (%p149) target = $region102
          $region99: #{tpu_custom_call.1} parent=94 // loop_body
            %v155 = vld [vmem:[%s153] sm:%s146]
            %156 = vst [vmem:[%s154] sm:%s146] %v155
          $region100: #{tpu_custom_call.1} parent=94 // loop_footer
            %s152 = sadd.s32 1, %s148
          $region101: #{tpu_custom_call.1} parent=94 // loop_footer_branch
            %147 = sbr.rel target = $region97
          $region102: #{tpu_custom_call.1} parent=94 // loop_exit
            _
        $region95: #{tpu_custom_call.1} parent=79 // pred_fallthru
          _
      $region80: #{tpu_custom_call.1} parent=76 // pred_fallthru
        _
      // Predicated region
      $region81: #{tpu_custom_call.1} parent=76 // pred_check
        %p122 = pneg %p118
      $region82: #{tpu_custom_call.1} parent=76 // pred_check_branch
        %124 = sbr.rel (%p122) target = $region84
      $region83: #{tpu_custom_call.1} parent=76 // pred_region
        %s125 = sshllo.u32 0, 1
        loop: start=0, step=1, limit=1
        $region85: #{tpu_custom_call.1} parent=83 // loop_pre_header
          _
        $region86: #{tpu_custom_call.1} parent=83 // loop_header
          %s127 = sphi 0, %s131
          %p128 = scmp.ge.s32.totalorder %s127, 1
          %s132 = sphi %s3, %s3
          %s133 = sphi [#allocation4], [#allocation4]
        $region87: #{tpu_custom_call.1} parent=83 // loop_header_branch
          %130 = sbr.rel (%p128) target = $region91
        $region88: #{tpu_custom_call.1} parent=83 // loop_body
          %v134 = vld [vmem:[%s132] sm:%s125]
          %135 = vst [vmem:[%s133] sm:%s125] %v134
        $region89: #{tpu_custom_call.1} parent=83 // loop_footer
          %s131 = sadd.s32 1, %s127
        $region90: #{tpu_custom_call.1} parent=83 // loop_footer_branch
          %126 = sbr.rel target = $region86
        $region91: #{tpu_custom_call.1} parent=83 // loop_exit
          _
      $region84: #{tpu_custom_call.1} parent=76 // pred_fallthru
        _
      // Predicated region
      $region103: #{tpu_custom_call.1} parent=76 // pred_check
        _
      $region104: #{tpu_custom_call.1} parent=76 // pred_check_branch
        %159 = sbr.rel (0) target = $region106
      $region105: #{tpu_custom_call.1} parent=76 // pred_region
        %160 = vsyncadd [#allocation13], 16
      $region106: #{tpu_custom_call.1} parent=76 // pred_fallthru
        _
      %s161 = smul.u32 1, 1
      %s162 = sshll.u32 %s161, 4
      %163 = dma.done [#allocation13], %s162
    $region107: #{tpu_custom_call.1} parent=8
      #allocation15 [shape = 's32[1]{0}', space=sflag, size = 0x4, scoped, tag = 'scoped memory for tpu_custom_call.1']
      %p165 = scmp.lt.u32.totalorder 32, 8
      %p166 = pneg %p165
      // Predicated region
      $region108: #{tpu_custom_call.1} parent=107 // pred_check
        _
      $region109: #{tpu_custom_call.1} parent=107 // pred_check_branch
        %168 = sbr.rel (%p165) target = $region111
      $region110: #{tpu_custom_call.1} parent=107 // pred_region
        %s183 = sand.u32 32, 7
        %p184 = scmp.eq.s32.totalorder %s183, 0
        // Predicated region
        $region123: #{tpu_custom_call.1} parent=110 // pred_check
          %p185 = pneg %p184
        $region124: #{tpu_custom_call.1} parent=110 // pred_check_branch
          %187 = sbr.rel (%p185) target = $region126
        $region125: #{tpu_custom_call.1} parent=110 // pred_region
          loop: start=0, step=1, limit=1
          $region127: #{tpu_custom_call.1} parent=125 // loop_pre_header
            _
          $region128: #{tpu_custom_call.1} parent=125 // loop_header
            %s189 = sphi 0, %s193
            %p190 = scmp.ge.s32.totalorder %s189, 1
            %s194 = sphi %s4, %s4
            %s195 = sphi [#allocation5], [#allocation5]
          $region129: #{tpu_custom_call.1} parent=125 // loop_header_branch
            %192 = sbr.rel (%p190) target = $region133
          $region130: #{tpu_custom_call.1} parent=125 // loop_body
            %v196 = vld [vmem:[%s194] sm:$0xff]
            %197 = vst [vmem:[%s195] sm:$0xff] %v196
            %v198 = vld [vmem:[%s194 + $0x8] sm:$0xff]
            %199 = vst [vmem:[%s195 + $0x8] sm:$0xff] %v198
            %v200 = vld [vmem:[%s194 + $0x10] sm:$0xff]
            %201 = vst [vmem:[%s195 + $0x10] sm:$0xff] %v200
            %v202 = vld [vmem:[%s194 + $0x18] sm:$0xff]
            %203 = vst [vmem:[%s195 + $0x18] sm:$0xff] %v202
          $region131: #{tpu_custom_call.1} parent=125 // loop_footer
            %s193 = sadd.s32 1, %s189
          $region132: #{tpu_custom_call.1} parent=125 // loop_footer_branch
            %188 = sbr.rel target = $region128
          $region133: #{tpu_custom_call.1} parent=125 // loop_exit
            _
        $region126: #{tpu_custom_call.1} parent=110 // pred_fallthru
          _
        %p204 = pneg %p184
        // Predicated region
        $region134: #{tpu_custom_call.1} parent=110 // pred_check
          _
        $region135: #{tpu_custom_call.1} parent=110 // pred_check_branch
          %206 = sbr.rel (%p184) target = $region137
        $region136: #{tpu_custom_call.1} parent=110 // pred_region
          %s207 = sand.u32 32, 7
        $region137: #{tpu_custom_call.1} parent=110 // pred_fallthru
          _
      $region111: #{tpu_custom_call.1} parent=107 // pred_fallthru
        _
      // Predicated region
      $region112: #{tpu_custom_call.1} parent=107 // pred_check
        %p169 = pneg %p165
      $region113: #{tpu_custom_call.1} parent=107 // pred_check_branch
        %171 = sbr.rel (%p169) target = $region115
      $region114: #{tpu_custom_call.1} parent=107 // pred_region
        %s172 = sshllo.u32 0, 32
        loop: start=0, step=1, limit=1
        $region116: #{tpu_custom_call.1} parent=114 // loop_pre_header
          _
        $region117: #{tpu_custom_call.1} parent=114 // loop_header
          %s174 = sphi 0, %s178
          %p175 = scmp.ge.s32.totalorder %s174, 1
          %s179 = sphi %s4, %s4
          %s180 = sphi [#allocation5], [#allocation5]
        $region118: #{tpu_custom_call.1} parent=114 // loop_header_branch
          %177 = sbr.rel (%p175) target = $region122
        $region119: #{tpu_custom_call.1} parent=114 // loop_body
          %v181 = vld [vmem:[%s179] sm:%s172]
          %182 = vst [vmem:[%s180] sm:%s172] %v181
        $region120: #{tpu_custom_call.1} parent=114 // loop_footer
          %s178 = sadd.s32 1, %s174
        $region121: #{tpu_custom_call.1} parent=114 // loop_footer_branch
          %173 = sbr.rel target = $region117
        $region122: #{tpu_custom_call.1} parent=114 // loop_exit
          _
      $region115: #{tpu_custom_call.1} parent=107 // pred_fallthru
        _
      // Predicated region
      $region138: #{tpu_custom_call.1} parent=107 // pred_check
        _
      $region139: #{tpu_custom_call.1} parent=107 // pred_check_branch
        %210 = sbr.rel (0) target = $region141
      $region140: #{tpu_custom_call.1} parent=107 // pred_region
        %211 = vsyncadd [#allocation15], 512
      $region141: #{tpu_custom_call.1} parent=107 // pred_fallthru
        _
      %s212 = smul.u32 32, 1
      %s213 = sshll.u32 %s212, 4
      %214 = dma.done [#allocation15], %s213
    $region142: #{tpu_custom_call.1} parent=8
      #allocation17 [shape = 's32[1]{0}', space=sflag, size = 0x4, scoped, tag = 'scoped memory for tpu_custom_call.1']
      %p216 = scmp.lt.u32.totalorder 1, 8
      %p217 = pneg %p216
      // Predicated region
      $region143: #{tpu_custom_call.1} parent=142 // pred_check
        _
      $region144: #{tpu_custom_call.1} parent=142 // pred_check_branch
        %219 = sbr.rel (%p216) target = $region146
      $region145: #{tpu_custom_call.1} parent=142 // pred_region
        %s234 = sand.u32 1, 7
        %p235 = scmp.eq.s32.totalorder %s234, 0
        %p236 = pneg %p235
        // Predicated region
        $region158: #{tpu_custom_call.1} parent=145 // pred_check
          _
        $region159: #{tpu_custom_call.1} parent=145 // pred_check_branch
          %238 = sbr.rel (%p235) target = $region161
        $region160: #{tpu_custom_call.1} parent=145 // pred_region
          %s239 = sand.u32 1, 7
          %s240 = ssub.s32 1, %s239
          %s241 = scalar_lea.vmem %s5, %s240
          %s242 = ssub.s32 1, %s239
          %s243 = scalar_lea.vmem [#allocation6], %s242
          %s244 = sshllo.u32 0, %s239
          loop: start=0, step=1, limit=1
          $region162: #{tpu_custom_call.1} parent=160 // loop_pre_header
            _
          $region163: #{tpu_custom_call.1} parent=160 // loop_header
            %s246 = sphi 0, %s250
            %p247 = scmp.ge.s32.totalorder %s246, 1
            %s251 = sphi %s241, %s241
            %s252 = sphi %s243, %s243
          $region164: #{tpu_custom_call.1} parent=160 // loop_header_branch
            %249 = sbr.rel (%p247) target = $region168
          $region165: #{tpu_custom_call.1} parent=160 // loop_body
            %v253 = vld [vmem:[%s251] sm:%s244]
            %254 = vst [vmem:[%s252] sm:%s244] %v253
          $region166: #{tpu_custom_call.1} parent=160 // loop_footer
            %s250 = sadd.s32 1, %s246
          $region167: #{tpu_custom_call.1} parent=160 // loop_footer_branch
            %245 = sbr.rel target = $region163
          $region168: #{tpu_custom_call.1} parent=160 // loop_exit
            _
        $region161: #{tpu_custom_call.1} parent=145 // pred_fallthru
          _
      $region146: #{tpu_custom_call.1} parent=142 // pred_fallthru
        _
      // Predicated region
      $region147: #{tpu_custom_call.1} parent=142 // pred_check
        %p220 = pneg %p216
      $region148: #{tpu_custom_call.1} parent=142 // pred_check_branch
        %222 = sbr.rel (%p220) target = $region150
      $region149: #{tpu_custom_call.1} parent=142 // pred_region
        %s223 = sshllo.u32 0, 1
        loop: start=0, step=1, limit=1
        $region151: #{tpu_custom_call.1} parent=149 // loop_pre_header
          _
        $region152: #{tpu_custom_call.1} parent=149 // loop_header
          %s225 = sphi 0, %s229
          %p226 = scmp.ge.s32.totalorder %s225, 1
          %s230 = sphi %s5, %s5
          %s231 = sphi [#allocation6], [#allocation6]
        $region153: #{tpu_custom_call.1} parent=149 // loop_header_branch
          %228 = sbr.rel (%p226) target = $region157
        $region154: #{tpu_custom_call.1} parent=149 // loop_body
          %v232 = vld [vmem:[%s230] sm:%s223]
          %233 = vst [vmem:[%s231] sm:%s223] %v232
        $region155: #{tpu_custom_call.1} parent=149 // loop_footer
          %s229 = sadd.s32 1, %s225
        $region156: #{tpu_custom_call.1} parent=149 // loop_footer_branch
          %224 = sbr.rel target = $region152
        $region157: #{tpu_custom_call.1} parent=149 // loop_exit
          _
      $region150: #{tpu_custom_call.1} parent=142 // pred_fallthru
        _
      // Predicated region
      $region169: #{tpu_custom_call.1} parent=142 // pred_check
        _
      $region170: #{tpu_custom_call.1} parent=142 // pred_check_branch
        %257 = sbr.rel (0) target = $region172
      $region171: #{tpu_custom_call.1} parent=142 // pred_region
        %258 = vsyncadd [#allocation17], 16
      $region172: #{tpu_custom_call.1} parent=142 // pred_fallthru
        _
      %s259 = smul.u32 1, 1
      %s260 = sshll.u32 %s259, 4
      %261 = dma.done [#allocation17], %s260
  $region9: #{tpu_custom_call.1} parent=0 // pred_fallthru
    _
  %v262 = vld [vmem:[%s0] sm:$0xff]
  %v263 = vld [vmem:[%s0 + $0x8] sm:$0xff]
  %v264 = vld [vmem:[%s0 + $0x10] sm:$0xff]
  %v265 = vld [vmem:[%s0 + $0x18] sm:$0xff]
  %v266 = vld [vmem:[#allocation2] sm:$0xf]
  %v267 = vld [vmem:[#allocation4] sm:$0x1]
  %v269 = vlaneseq
  %v270 = vshrl.u32 %v269, 7
  %v271 = vsub.s32 0, %v270
  %v272 = vrot.slane %v267, %v271
  %vm274 = vcmask 31744
  %v276 = vsel %vm274, %v262, 0
  %v279 = vsel %vm274, %v263, 0
  %v282 = vsel %vm274, %v264, 0
  %v285 = vsel %vm274, %v265, 0
  %vm287 = vcmask 1043456
  %v289 = vsel %vm287, %v266, 0
  %291 = vmatprep.subr.mxu0 0.0
  %292 = vmatpush1.msra.mxu0 %v289
  %293 = vmatprep.subr.mxu0 0.0
  %294 = vmatpush1.msra.mxu0 0.0
  %295 = vmatprep.subr.mxu0 0.0
  %296 = vmatpush1.msra.mxu0 0.0
  %297 = vmatprep.subr.mxu0 0.0
  %298 = vmatpush1.msra.mxu0 0.0
  %299 = vmatprep.subr.mxu0 0.0
  %300 = vmatpush1.msra.mxu0 0.0
  %301 = vmatprep.subr.mxu0 0.0
  %302 = vmatpush1.msra.mxu0 0.0
  %303 = vmatprep.subr.mxu0 0.0
  %304 = vmatpush1.msra.mxu0 0.0
  %305 = vmatprep.subr.mxu0 0.0
  %306 = vmatpush1.msra.mxu0 0.0
  %307 = vmatprep.subr.mxu0 0.0
  %308 = vmatpush1.msra.mxu0 0.0
  %309 = vmatprep.subr.mxu0 0.0
  %310 = vmatpush1.msra.mxu0 0.0
  %311 = vmatprep.subr.mxu0 0.0
  %312 = vmatpush1.msra.mxu0 0.0
  %313 = vmatprep.subr.mxu0 0.0
  %314 = vmatpush1.msra.mxu0 0.0
  %315 = vmatprep.subr.mxu0 0.0
  %316 = vmatpush1.msra.mxu0 0.0
  %317 = vmatprep.subr.mxu0 0.0
  %318 = vmatpush1.msra.mxu0 0.0
  %319 = vmatprep.subr.mxu0 0.0
  %320 = vmatpush1.msra.mxu0 0.0
  %321 = vmatprep.subr.mxu0 0.0
  %322 = vmatpush1.msra.mxu0 0.0
  %323 = vmatprep.subr.mxu0 0.0
  %324 = vmatpush1.msra.mxu0 0.0
  %325 = vmatprep.subr.mxu0 0.0
  %326 = vmatpush1.msra.mxu0 0.0
  %327 = vmatprep.subr.mxu0 0.0
  %328 = vmatpush1.msra.mxu0 0.0
  %329 = vmatprep.subr.mxu0 0.0
  %330 = vmatpush1.msra.mxu0 0.0
  %331 = vmatprep.subr.mxu0 0.0
  %332 = vmatpush1.msra.mxu0 0.0
  %333 = vmatprep.subr.mxu0 0.0
  %334 = vmatpush1.msra.mxu0 0.0
  %335 = vmatprep.subr.mxu0 0.0
  %336 = vmatpush1.msra.mxu0 0.0
  %337 = vmatprep.subr.mxu0 0.0
  %338 = vmatpush1.msra.mxu0 0.0
  %339 = vmatprep.subr.mxu0 0.0
  %340 = vmatpush1.msra.mxu0 0.0
  %341 = vmatprep.subr.mxu0 0.0
  %342 = vmatpush1.msra.mxu0 0.0
  %343 = vmatprep.subr.mxu0 0.0
  %344 = vmatpush1.msra.mxu0 0.0
  %345 = vmatprep.subr.mxu0 0.0
  %346 = vmatpush1.msra.mxu0 0.0
  %347 = vmatprep.subr.mxu0 0.0
  %348 = vmatpush1.msra.mxu0 0.0
  %349 = vmatprep.subr.mxu0 0.0
  %350 = vmatpush1.msra.mxu0 0.0
  %351 = vmatprep.subr.mxu0 0.0
  %352 = vmatpush1.msra.mxu0 0.0
  %353 = vmatprep.subr.mxu0 0.0
  %354 = vmatpush1.msra.mxu0 0.0
  %355 = vmatprep.mubr.f32.mxu0 0.0
  %356 = vmatmul.mubr.f32.gmra.mrb[0].mxu0 %v276
  %v357 = vpop.f32.mrb[0].mxu0
  %v358 = vadd.f32 %v272, %v357
  %v359 = vpop.f32.mrb[0].mxu0
  %360 = vmatprep.mubr.f32.mxu0 0.0
  %361 = vmatmul.mubr.f32.gmra.mrb[0].mxu0 %v279
  %v362 = vpop.f32.mrb[0].mxu0
  %v363 = vadd.f32 %v272, %v362
  %v364 = vpop.f32.mrb[0].mxu0
  %365 = vmatprep.mubr.f32.mxu0 0.0
  %366 = vmatmul.mubr.f32.gmra.mrb[0].mxu0 %v282
  %v367 = vpop.f32.mrb[0].mxu0
  %v368 = vadd.f32 %v272, %v367
  %v369 = vpop.f32.mrb[0].mxu0
  %370 = vmatprep.mubr.f32.mxu0 0.0
  %371 = vmatmul.mubr.f32.gmra.mrb[0].mxu0 %v285
  %v372 = vpop.f32.mrb[0].mxu0
  %v373 = vadd.f32 %v272, %v372
  %v374 = vpop.f32.mrb[0].mxu0
  %375 = vdwg.mxu0
  %vm376 = vcmask 261120
  %377 = vst.msk [vmem:[#allocation8] sm:$0xff] %vm376, %v358
  %378 = vst.msk [vmem:[#allocation8 + $0x8] sm:$0xff] %vm376, %v363
  %379 = vst.msk [vmem:[#allocation8 + $0x10] sm:$0xff] %vm376, %v368
  %380 = vst.msk [vmem:[#allocation8 + $0x18] sm:$0xff] %vm376, %v373
  %v381 = vld [vmem:[#allocation3] sm:$0xff]
  %v382 = vld [vmem:[#allocation3 + $0x8] sm:$0xff]
  %v383 = vld [vmem:[#allocation3 + $0x10] sm:$0xff]
  %v384 = vld [vmem:[#allocation3 + $0x18] sm:$0xff]
  %v385 = vld [vmem:[#allocation7] sm:$0x3]
  %v386 = vld [vmem:[#allocation8] sm:$0x1]
  %v387 = vld [vmem:[#allocation8 + $0x10] sm:$0x1]
  %v389 = vsel %vm376, %v385, 0
  %391 = vmatprep.subr.mxu0 0.0
  %392 = vmatpush1.msra.mxu0 %v381
  %393 = vmatprep.subr.mxu0 0.0
  %394 = vmatpush1.msra.mxu0 %v382
  %395 = vmatprep.subr.mxu0 0.0
  %396 = vmatpush1.msra.mxu0 %v383
  %397 = vmatprep.subr.mxu0 0.0
  %398 = vmatpush1.msra.mxu0 %v384
  %399 = vmatprep.subr.mxu0 0.0
  %400 = vmatpush1.msra.mxu0 0.0
  %401 = vmatprep.subr.mxu0 0.0
  %402 = vmatpush1.msra.mxu0 0.0
  %403 = vmatprep.subr.mxu0 0.0
  %404 = vmatpush1.msra.mxu0 0.0
  %405 = vmatprep.subr.mxu0 0.0
  %406 = vmatpush1.msra.mxu0 0.0
  %407 = vmatprep.subr.mxu0 0.0
  %408 = vmatpush1.msra.mxu0 0.0
  %409 = vmatprep.subr.mxu0 0.0
  %410 = vmatpush1.msra.mxu0 0.0
  %411 = vmatprep.subr.mxu0 0.0
  %412 = vmatpush1.msra.mxu0 0.0
  %413 = vmatprep.subr.mxu0 0.0
  %414 = vmatpush1.msra.mxu0 0.0
  %415 = vmatprep.subr.mxu0 0.0
  %416 = vmatpush1.msra.mxu0 0.0
  %417 = vmatprep.subr.mxu0 0.0
  %418 = vmatpush1.msra.mxu0 0.0
  %419 = vmatprep.subr.mxu0 0.0
  %420 = vmatpush1.msra.mxu0 0.0
  %421 = vmatprep.subr.mxu0 0.0
  %422 = vmatpush1.msra.mxu0 0.0
  %423 = vmatprep.subr.mxu0 0.0
  %424 = vmatpush1.msra.mxu0 0.0
  %425 = vmatprep.subr.mxu0 0.0
  %426 = vmatpush1.msra.mxu0 0.0
  %427 = vmatprep.subr.mxu0 0.0
  %428 = vmatpush1.msra.mxu0 0.0
  %429 = vmatprep.subr.mxu0 0.0
  %430 = vmatpush1.msra.mxu0 0.0
  %431 = vmatprep.subr.mxu0 0.0
  %432 = vmatpush1.msra.mxu0 0.0
  %433 = vmatprep.subr.mxu0 0.0
  %434 = vmatpush1.msra.mxu0 0.0
  %435 = vmatprep.subr.mxu0 0.0
  %436 = vmatpush1.msra.mxu0 0.0
  %437 = vmatprep.subr.mxu0 0.0
  %438 = vmatpush1.msra.mxu0 0.0
  %439 = vmatprep.subr.mxu0 0.0
  %440 = vmatpush1.msra.mxu0 0.0
  %441 = vmatprep.subr.mxu0 0.0
  %442 = vmatpush1.msra.mxu0 0.0
  %443 = vmatprep.subr.mxu0 0.0
  %444 = vmatpush1.msra.mxu0 0.0
  %445 = vmatprep.subr.mxu0 0.0
  %446 = vmatpush1.msra.mxu0 0.0
  %447 = vmatprep.subr.mxu0 0.0
  %448 = vmatpush1.msra.mxu0 0.0
  %449 = vmatprep.subr.mxu0 0.0
  %450 = vmatpush1.msra.mxu0 0.0
  %451 = vmatprep.subr.mxu0 0.0
  %452 = vmatpush1.msra.mxu0 0.0
  %453 = vmatprep.subr.mxu0 0.0
  %454 = vmatpush1.msra.mxu0 0.0
  %455 = vmatprep.mubr.f32.mxu0 0.0
  %456 = vmatmul.mubr.f32.gmra.mrb[0].mxu0 %v389
  %v457 = vpop.f32.mrb[0].mxu0
  %v458 = vadd.f32 0.0, %v457
  %v459 = vpop.f32.mrb[0].mxu0
  %460 = vdwg.mxu0
  %v462 = vrot.slane %v458, 1
  %v465 = vadd.f32 %v386, %v458
  %v466 = vadd.f32 %v387, %v462
  %v467 = vtanh.pop %v465
  %v468 = vtanh.pop %v466
  %vm469 = vcmask 253952
  %470 = vst.msk [vmem:[#allocation8] sm:$0x1] %vm469, %v467
  %471 = vst.msk [vmem:[#allocation8 + $0x10] sm:$0x1] %vm469, %v468
  %v472 = vld [vmem:[#allocation8 + $0x1] sm:$0x1]
  %v473 = vld [vmem:[#allocation8 + $0x11] sm:$0x1]
  %v476 = vrot.slane %v468, 7
  %vm477 = vcmask 1041409
  %v478 = vsel %vm477, %v476, %v467
  %v479 = vsel %vm376, %v478, 0
  %481 = vmatprep.subr.mxu0 0.0
  %482 = vmatpush1.msra.mxu0 %v381
  %483 = vmatprep.subr.mxu0 0.0
  %484 = vmatpush1.msra.mxu0 %v382
  %485 = vmatprep.subr.mxu0 0.0
  %486 = vmatpush1.msra.mxu0 %v383
  %487 = vmatprep.subr.mxu0 0.0
  %488 = vmatpush1.msra.mxu0 %v384
  %489 = vmatprep.subr.mxu0 0.0
  %490 = vmatpush1.msra.mxu0 0.0
  %491 = vmatprep.subr.mxu0 0.0
  %492 = vmatpush1.msra.mxu0 0.0
  %493 = vmatprep.subr.mxu0 0.0
  %494 = vmatpush1.msra.mxu0 0.0
  %495 = vmatprep.subr.mxu0 0.0
  %496 = vmatpush1.msra.mxu0 0.0
  %497 = vmatprep.subr.mxu0 0.0
  %498 = vmatpush1.msra.mxu0 0.0
  %499 = vmatprep.subr.mxu0 0.0
  %500 = vmatpush1.msra.mxu0 0.0
  %501 = vmatprep.subr.mxu0 0.0
  %502 = vmatpush1.msra.mxu0 0.0
  %503 = vmatprep.subr.mxu0 0.0
  %504 = vmatpush1.msra.mxu0 0.0
  %505 = vmatprep.subr.mxu0 0.0
  %506 = vmatpush1.msra.mxu0 0.0
  %507 = vmatprep.subr.mxu0 0.0
  %508 = vmatpush1.msra.mxu0 0.0
  %509 = vmatprep.subr.mxu0 0.0
  %510 = vmatpush1.msra.mxu0 0.0
  %511 = vmatprep.subr.mxu0 0.0
  %512 = vmatpush1.msra.mxu0 0.0
  %513 = vmatprep.subr.mxu0 0.0
  %514 = vmatpush1.msra.mxu0 0.0
  %515 = vmatprep.subr.mxu0 0.0
  %516 = vmatpush1.msra.mxu0 0.0
  %517 = vmatprep.subr.mxu0 0.0
  %518 = vmatpush1.msra.mxu0 0.0
  %519 = vmatprep.subr.mxu0 0.0
  %520 = vmatpush1.msra.mxu0 0.0
  %521 = vmatprep.subr.mxu0 0.0
  %522 = vmatpush1.msra.mxu0 0.0
  %523 = vmatprep.subr.mxu0 0.0
  %524 = vmatpush1.msra.mxu0 0.0
  %525 = vmatprep.subr.mxu0 0.0
  %526 = vmatpush1.msra.mxu0 0.0
  %527 = vmatprep.subr.mxu0 0.0
  %528 = vmatpush1.msra.mxu0 0.0
  %529 = vmatprep.subr.mxu0 0.0
  %530 = vmatpush1.msra.mxu0 0.0
  %531 = vmatprep.subr.mxu0 0.0
  %532 = vmatpush1.msra.mxu0 0.0
  %533 = vmatprep.subr.mxu0 0.0
  %534 = vmatpush1.msra.mxu0 0.0
  %535 = vmatprep.subr.mxu0 0.0
  %536 = vmatpush1.msra.mxu0 0.0
  %537 = vmatprep.subr.mxu0 0.0
  %538 = vmatpush1.msra.mxu0 0.0
  %539 = vmatprep.subr.mxu0 0.0
  %540 = vmatpush1.msra.mxu0 0.0
  %541 = vmatprep.subr.mxu0 0.0
  %542 = vmatpush1.msra.mxu0 0.0
  %543 = vmatprep.subr.mxu0 0.0
  %544 = vmatpush1.msra.mxu0 0.0
  %545 = vmatprep.mubr.f32.mxu0 0.0
  %546 = vmatmul.mubr.f32.gmra.mrb[0].mxu0 %v479
  %v547 = vpop.f32.mrb[0].mxu0
  %v548 = vadd.f32 0.0, %v547
  %v549 = vpop.f32.mrb[0].mxu0
  %550 = vdwg.mxu0
  %v552 = vrot.slane %v548, 1
  %v555 = vadd.f32 %v472, %v548
  %v556 = vadd.f32 %v473, %v552
  %v557 = vtanh.pop %v555
  %v558 = vtanh.pop %v556
  %559 = vst.msk [vmem:[#allocation8 + $0x1] sm:$0x1] %vm469, %v557
  %560 = vst.msk [vmem:[#allocation8 + $0x11] sm:$0x1] %vm469, %v558
  %v561 = vld [vmem:[#allocation8 + $0x2] sm:$0x1]
  %v562 = vld [vmem:[#allocation8 + $0x12] sm:$0x1]
  %v565 = vrot.slane %v558, 7
  %v566 = vsel %vm477, %v565, %v557
  %v567 = vsel %vm376, %v566, 0
  %569 = vmatprep.subr.mxu0 0.0
  %570 = vmatpush1.msra.mxu0 %v381
  %571 = vmatprep.subr.mxu0 0.0
  %572 = vmatpush1.msra.mxu0 %v382
  %573 = vmatprep.subr.mxu0 0.0
  %574 = vmatpush1.msra.mxu0 %v383
  %575 = vmatprep.subr.mxu0 0.0
  %576 = vmatpush1.msra.mxu0 %v384
  %577 = vmatprep.subr.mxu0 0.0
  %578 = vmatpush1.msra.mxu0 0.0
  %579 = vmatprep.subr.mxu0 0.0
  %580 = vmatpush1.msra.mxu0 0.0
  %581 = vmatprep.subr.mxu0 0.0
  %582 = vmatpush1.msra.mxu0 0.0
  %583 = vmatprep.subr.mxu0 0.0
  %584 = vmatpush1.msra.mxu0 0.0
  %585 = vmatprep.subr.mxu0 0.0
  %586 = vmatpush1.msra.mxu0 0.0
  %587 = vmatprep.subr.mxu0 0.0
  %588 = vmatpush1.msra.mxu0 0.0
  %589 = vmatprep.subr.mxu0 0.0
  %590 = vmatpush1.msra.mxu0 0.0
  %591 = vmatprep.subr.mxu0 0.0
  %592 = vmatpush1.msra.mxu0 0.0
  %593 = vmatprep.subr.mxu0 0.0
  %594 = vmatpush1.msra.mxu0 0.0
  %595 = vmatprep.subr.mxu0 0.0
  %596 = vmatpush1.msra.mxu0 0.0
  %597 = vmatprep.subr.mxu0 0.0
  %598 = vmatpush1.msra.mxu0 0.0
  %599 = vmatprep.subr.mxu0 0.0
  %600 = vmatpush1.msra.mxu0 0.0
  %601 = vmatprep.subr.mxu0 0.0
  %602 = vmatpush1.msra.mxu0 0.0
  %603 = vmatprep.subr.mxu0 0.0
  %604 = vmatpush1.msra.mxu0 0.0
  %605 = vmatprep.subr.mxu0 0.0
  %606 = vmatpush1.msra.mxu0 0.0
  %607 = vmatprep.subr.mxu0 0.0
  %608 = vmatpush1.msra.mxu0 0.0
  %609 = vmatprep.subr.mxu0 0.0
  %610 = vmatpush1.msra.mxu0 0.0
  %611 = vmatprep.subr.mxu0 0.0
  %612 = vmatpush1.msra.mxu0 0.0
  %613 = vmatprep.subr.mxu0 0.0
  %614 = vmatpush1.msra.mxu0 0.0
  %615 = vmatprep.subr.mxu0 0.0
  %616 = vmatpush1.msra.mxu0 0.0
  %617 = vmatprep.subr.mxu0 0.0
  %618 = vmatpush1.msra.mxu0 0.0
  %619 = vmatprep.subr.mxu0 0.0
  %620 = vmatpush1.msra.mxu0 0.0
  %621 = vmatprep.subr.mxu0 0.0
  %622 = vmatpush1.msra.mxu0 0.0
  %623 = vmatprep.subr.mxu0 0.0
  %624 = vmatpush1.msra.mxu0 0.0
  %625 = vmatprep.subr.mxu0 0.0
  %626 = vmatpush1.msra.mxu0 0.0
  %627 = vmatprep.subr.mxu0 0.0
  %628 = vmatpush1.msra.mxu0 0.0
  %629 = vmatprep.subr.mxu0 0.0
  %630 = vmatpush1.msra.mxu0 0.0
  %631 = vmatprep.subr.mxu0 0.0
  %632 = vmatpush1.msra.mxu0 0.0
  %633 = vmatprep.mubr.f32.mxu0 0.0
  %634 = vmatmul.mubr.f32.gmra.mrb[0].mxu0 %v567
  %v635 = vpop.f32.mrb[0].mxu0
  %v636 = vadd.f32 0.0, %v635
  %v637 = vpop.f32.mrb[0].mxu0
  %638 = vdwg.mxu0
  %v640 = vrot.slane %v636, 1
  %v643 = vadd.f32 %v561, %v636
  %v644 = vadd.f32 %v562, %v640
  %v645 = vtanh.pop %v643
  %v646 = vtanh.pop %v644
  %647 = vst.msk [vmem:[#allocation8 + $0x2] sm:$0x1] %vm469, %v645
  %648 = vst.msk [vmem:[#allocation8 + $0x12] sm:$0x1] %vm469, %v646
  %v649 = vld [vmem:[#allocation8 + $0x3] sm:$0x1]
  %v650 = vld [vmem:[#allocation8 + $0x13] sm:$0x1]
  %v653 = vrot.slane %v646, 7
  %v654 = vsel %vm477, %v653, %v645
  %v655 = vsel %vm376, %v654, 0
  %657 = vmatprep.subr.mxu0 0.0
  %658 = vmatpush1.msra.mxu0 %v381
  %659 = vmatprep.subr.mxu0 0.0
  %660 = vmatpush1.msra.mxu0 %v382
  %661 = vmatprep.subr.mxu0 0.0
  %662 = vmatpush1.msra.mxu0 %v383
  %663 = vmatprep.subr.mxu0 0.0
  %664 = vmatpush1.msra.mxu0 %v384
  %665 = vmatprep.subr.mxu0 0.0
  %666 = vmatpush1.msra.mxu0 0.0
  %667 = vmatprep.subr.mxu0 0.0
  %668 = vmatpush1.msra.mxu0 0.0
  %669 = vmatprep.subr.mxu0 0.0
  %670 = vmatpush1.msra.mxu0 0.0
  %671 = vmatprep.subr.mxu0 0.0
  %672 = vmatpush1.msra.mxu0 0.0
  %673 = vmatprep.subr.mxu0 0.0
  %674 = vmatpush1.msra.mxu0 0.0
  %675 = vmatprep.subr.mxu0 0.0
  %676 = vmatpush1.msra.mxu0 0.0
  %677 = vmatprep.subr.mxu0 0.0
  %678 = vmatpush1.msra.mxu0 0.0
  %679 = vmatprep.subr.mxu0 0.0
  %680 = vmatpush1.msra.mxu0 0.0
  %681 = vmatprep.subr.mxu0 0.0
  %682 = vmatpush1.msra.mxu0 0.0
  %683 = vmatprep.subr.mxu0 0.0
  %684 = vmatpush1.msra.mxu0 0.0
  %685 = vmatprep.subr.mxu0 0.0
  %686 = vmatpush1.msra.mxu0 0.0
  %687 = vmatprep.subr.mxu0 0.0
  %688 = vmatpush1.msra.mxu0 0.0
  %689 = vmatprep.subr.mxu0 0.0
  %690 = vmatpush1.msra.mxu0 0.0
  %691 = vmatprep.subr.mxu0 0.0
  %692 = vmatpush1.msra.mxu0 0.0
  %693 = vmatprep.subr.mxu0 0.0
  %694 = vmatpush1.msra.mxu0 0.0
  %695 = vmatprep.subr.mxu0 0.0
  %696 = vmatpush1.msra.mxu0 0.0
  %697 = vmatprep.subr.mxu0 0.0
  %698 = vmatpush1.msra.mxu0 0.0
  %699 = vmatprep.subr.mxu0 0.0
  %700 = vmatpush1.msra.mxu0 0.0
  %701 = vmatprep.subr.mxu0 0.0
  %702 = vmatpush1.msra.mxu0 0.0
  %703 = vmatprep.subr.mxu0 0.0
  %704 = vmatpush1.msra.mxu0 0.0
  %705 = vmatprep.subr.mxu0 0.0
  %706 = vmatpush1.msra.mxu0 0.0
  %707 = vmatprep.subr.mxu0 0.0
  %708 = vmatpush1.msra.mxu0 0.0
  %709 = vmatprep.subr.mxu0 0.0
  %710 = vmatpush1.msra.mxu0 0.0
  %711 = vmatprep.subr.mxu0 0.0
  %712 = vmatpush1.msra.mxu0 0.0
  %713 = vmatprep.subr.mxu0 0.0
  %714 = vmatpush1.msra.mxu0 0.0
  %715 = vmatprep.subr.mxu0 0.0
  %716 = vmatpush1.msra.mxu0 0.0
  %717 = vmatprep.subr.mxu0 0.0
  %718 = vmatpush1.msra.mxu0 0.0
  %719 = vmatprep.subr.mxu0 0.0
  %720 = vmatpush1.msra.mxu0 0.0
  %721 = vmatprep.mubr.f32.mxu0 0.0
  %722 = vmatmul.mubr.f32.gmra.mrb[0].mxu0 %v655
  %v723 = vpop.f32.mrb[0].mxu0
  %v724 = vadd.f32 0.0, %v723
  %v725 = vpop.f32.mrb[0].mxu0
  %726 = vdwg.mxu0
  %v728 = vrot.slane %v724, 1
  %v731 = vadd.f32 %v649, %v724
  %v732 = vadd.f32 %v650, %v728
  %v733 = vtanh.pop %v731
  %v734 = vtanh.pop %v732
  %735 = vst.msk [vmem:[#allocation8 + $0x3] sm:$0x1] %vm469, %v733
  %736 = vst.msk [vmem:[#allocation8 + $0x13] sm:$0x1] %vm469, %v734
  %v737 = vld [vmem:[#allocation8 + $0x4] sm:$0x1]
  %v738 = vld [vmem:[#allocation8 + $0x14] sm:$0x1]
  %v741 = vrot.slane %v734, 7
  %v742 = vsel %vm477, %v741, %v733
  %v743 = vsel %vm376, %v742, 0
  %745 = vmatprep.subr.mxu0 0.0
  %746 = vmatpush1.msra.mxu0 %v381
  %747 = vmatprep.subr.mxu0 0.0
  %748 = vmatpush1.msra.mxu0 %v382
  %749 = vmatprep.subr.mxu0 0.0
  %750 = vmatpush1.msra.mxu0 %v383
  %751 = vmatprep.subr.mxu0 0.0
  %752 = vmatpush1.msra.mxu0 %v384
  %753 = vmatprep.subr.mxu0 0.0
  %754 = vmatpush1.msra.mxu0 0.0
  %755 = vmatprep.subr.mxu0 0.0
  %756 = vmatpush1.msra.mxu0 0.0
  %757 = vmatprep.subr.mxu0 0.0
  %758 = vmatpush1.msra.mxu0 0.0
  %759 = vmatprep.subr.mxu0 0.0
  %760 = vmatpush1.msra.mxu0 0.0
  %761 = vmatprep.subr.mxu0 0.0
  %762 = vmatpush1.msra.mxu0 0.0
  %763 = vmatprep.subr.mxu0 0.0
  %764 = vmatpush1.msra.mxu0 0.0
  %765 = vmatprep.subr.mxu0 0.0
  %766 = vmatpush1.msra.mxu0 0.0
  %767 = vmatprep.subr.mxu0 0.0
  %768 = vmatpush1.msra.mxu0 0.0
  %769 = vmatprep.subr.mxu0 0.0
  %770 = vmatpush1.msra.mxu0 0.0
  %771 = vmatprep.subr.mxu0 0.0
  %772 = vmatpush1.msra.mxu0 0.0
  %773 = vmatprep.subr.mxu0 0.0
  %774 = vmatpush1.msra.mxu0 0.0
  %775 = vmatprep.subr.mxu0 0.0
  %776 = vmatpush1.msra.mxu0 0.0
  %777 = vmatprep.subr.mxu0 0.0
  %778 = vmatpush1.msra.mxu0 0.0
  %779 = vmatprep.subr.mxu0 0.0
  %780 = vmatpush1.msra.mxu0 0.0
  %781 = vmatprep.subr.mxu0 0.0
  %782 = vmatpush1.msra.mxu0 0.0
  %783 = vmatprep.subr.mxu0 0.0
  %784 = vmatpush1.msra.mxu0 0.0
  %785 = vmatprep.subr.mxu0 0.0
  %786 = vmatpush1.msra.mxu0 0.0
  %787 = vmatprep.subr.mxu0 0.0
  %788 = vmatpush1.msra.mxu0 0.0
  %789 = vmatprep.subr.mxu0 0.0
  %790 = vmatpush1.msra.mxu0 0.0
  %791 = vmatprep.subr.mxu0 0.0
  %792 = vmatpush1.msra.mxu0 0.0
  %793 = vmatprep.subr.mxu0 0.0
  %794 = vmatpush1.msra.mxu0 0.0
  %795 = vmatprep.subr.mxu0 0.0
  %796 = vmatpush1.msra.mxu0 0.0
  %797 = vmatprep.subr.mxu0 0.0
  %798 = vmatpush1.msra.mxu0 0.0
  %799 = vmatprep.subr.mxu0 0.0
  %800 = vmatpush1.msra.mxu0 0.0
  %801 = vmatprep.subr.mxu0 0.0
  %802 = vmatpush1.msra.mxu0 0.0
  %803 = vmatprep.subr.mxu0 0.0
  %804 = vmatpush1.msra.mxu0 0.0
  %805 = vmatprep.subr.mxu0 0.0
  %806 = vmatpush1.msra.mxu0 0.0
  %807 = vmatprep.subr.mxu0 0.0
  %808 = vmatpush1.msra.mxu0 0.0
  %809 = vmatprep.mubr.f32.mxu0 0.0
  %810 = vmatmul.mubr.f32.gmra.mrb[0].mxu0 %v743
  %v811 = vpop.f32.mrb[0].mxu0
  %v812 = vadd.f32 0.0, %v811
  %v813 = vpop.f32.mrb[0].mxu0
  %814 = vdwg.mxu0
  %v816 = vrot.slane %v812, 1
  %v819 = vadd.f32 %v737, %v812
  %v820 = vadd.f32 %v738, %v816
  %v821 = vtanh.pop %v819
  %v822 = vtanh.pop %v820
  %823 = vst.msk [vmem:[#allocation8 + $0x4] sm:$0x1] %vm469, %v821
  %824 = vst.msk [vmem:[#allocation8 + $0x14] sm:$0x1] %vm469, %v822
  %v825 = vld [vmem:[#allocation8 + $0x5] sm:$0x1]
  %v826 = vld [vmem:[#allocation8 + $0x15] sm:$0x1]
  %v829 = vrot.slane %v822, 7
  %v830 = vsel %vm477, %v829, %v821
  %v831 = vsel %vm376, %v830, 0
  %833 = vmatprep.subr.mxu0 0.0
  %834 = vmatpush1.msra.mxu0 %v381
  %835 = vmatprep.subr.mxu0 0.0
  %836 = vmatpush1.msra.mxu0 %v382
  %837 = vmatprep.subr.mxu0 0.0
  %838 = vmatpush1.msra.mxu0 %v383
  %839 = vmatprep.subr.mxu0 0.0
  %840 = vmatpush1.msra.mxu0 %v384
  %841 = vmatprep.subr.mxu0 0.0
  %842 = vmatpush1.msra.mxu0 0.0
  %843 = vmatprep.subr.mxu0 0.0
  %844 = vmatpush1.msra.mxu0 0.0
  %845 = vmatprep.subr.mxu0 0.0
  %846 = vmatpush1.msra.mxu0 0.0
  %847 = vmatprep.subr.mxu0 0.0
  %848 = vmatpush1.msra.mxu0 0.0
  %849 = vmatprep.subr.mxu0 0.0
  %850 = vmatpush1.msra.mxu0 0.0
  %851 = vmatprep.subr.mxu0 0.0
  %852 = vmatpush1.msra.mxu0 0.0
  %853 = vmatprep.subr.mxu0 0.0
  %854 = vmatpush1.msra.mxu0 0.0
  %855 = vmatprep.subr.mxu0 0.0
  %856 = vmatpush1.msra.mxu0 0.0
  %857 = vmatprep.subr.mxu0 0.0
  %858 = vmatpush1.msra.mxu0 0.0
  %859 = vmatprep.subr.mxu0 0.0
  %860 = vmatpush1.msra.mxu0 0.0
  %861 = vmatprep.subr.mxu0 0.0
  %862 = vmatpush1.msra.mxu0 0.0
  %863 = vmatprep.subr.mxu0 0.0
  %864 = vmatpush1.msra.mxu0 0.0
  %865 = vmatprep.subr.mxu0 0.0
  %866 = vmatpush1.msra.mxu0 0.0
  %867 = vmatprep.subr.mxu0 0.0
  %868 = vmatpush1.msra.mxu0 0.0
  %869 = vmatprep.subr.mxu0 0.0
  %870 = vmatpush1.msra.mxu0 0.0
  %871 = vmatprep.subr.mxu0 0.0
  %872 = vmatpush1.msra.mxu0 0.0
  %873 = vmatprep.subr.mxu0 0.0
  %874 = vmatpush1.msra.mxu0 0.0
  %875 = vmatprep.subr.mxu0 0.0
  %876 = vmatpush1.msra.mxu0 0.0
  %877 = vmatprep.subr.mxu0 0.0
  %878 = vmatpush1.msra.mxu0 0.0
  %879 = vmatprep.subr.mxu0 0.0
  %880 = vmatpush1.msra.mxu0 0.0
  %881 = vmatprep.subr.mxu0 0.0
  %882 = vmatpush1.msra.mxu0 0.0
  %883 = vmatprep.subr.mxu0 0.0
  %884 = vmatpush1.msra.mxu0 0.0
  %885 = vmatprep.subr.mxu0 0.0
  %886 = vmatpush1.msra.mxu0 0.0
  %887 = vmatprep.subr.mxu0 0.0
  %888 = vmatpush1.msra.mxu0 0.0
  %889 = vmatprep.subr.mxu0 0.0
  %890 = vmatpush1.msra.mxu0 0.0
  %891 = vmatprep.subr.mxu0 0.0
  %892 = vmatpush1.msra.mxu0 0.0
  %893 = vmatprep.subr.mxu0 0.0
  %894 = vmatpush1.msra.mxu0 0.0
  %895 = vmatprep.subr.mxu0 0.0
  %896 = vmatpush1.msra.mxu0 0.0
  %897 = vmatprep.mubr.f32.mxu0 0.0
  %898 = vmatmul.mubr.f32.gmra.mrb[0].mxu0 %v831
  %v899 = vpop.f32.mrb[0].mxu0
  %v900 = vadd.f32 0.0, %v899
  %v901 = vpop.f32.mrb[0].mxu0
  %902 = vdwg.mxu0
  %v904 = vrot.slane %v900, 1
  %v907 = vadd.f32 %v825, %v900
  %v908 = vadd.f32 %v826, %v904
  %v909 = vtanh.pop %v907
  %v910 = vtanh.pop %v908
  %911 = vst.msk [vmem:[#allocation8 + $0x5] sm:$0x1] %vm469, %v909
  %912 = vst.msk [vmem:[#allocation8 + $0x15] sm:$0x1] %vm469, %v910
  %v913 = vld [vmem:[#allocation8 + $0x6] sm:$0x1]
  %v914 = vld [vmem:[#allocation8 + $0x16] sm:$0x1]
  %v917 = vrot.slane %v910, 7
  %v918 = vsel %vm477, %v917, %v909
  %v919 = vsel %vm376, %v918, 0
  %921 = vmatprep.subr.mxu0 0.0
  %922 = vmatpush1.msra.mxu0 %v381
  %923 = vmatprep.subr.mxu0 0.0
  %924 = vmatpush1.msra.mxu0 %v382
  %925 = vmatprep.subr.mxu0 0.0
  %926 = vmatpush1.msra.mxu0 %v383
  %927 = vmatprep.subr.mxu0 0.0
  %928 = vmatpush1.msra.mxu0 %v384
  %929 = vmatprep.subr.mxu0 0.0
  %930 = vmatpush1.msra.mxu0 0.0
  %931 = vmatprep.subr.mxu0 0.0
  %932 = vmatpush1.msra.mxu0 0.0
  %933 = vmatprep.subr.mxu0 0.0
  %934 = vmatpush1.msra.mxu0 0.0
  %935 = vmatprep.subr.mxu0 0.0
  %936 = vmatpush1.msra.mxu0 0.0
  %937 = vmatprep.subr.mxu0 0.0
  %938 = vmatpush1.msra.mxu0 0.0
  %939 = vmatprep.subr.mxu0 0.0
  %940 = vmatpush1.msra.mxu0 0.0
  %941 = vmatprep.subr.mxu0 0.0
  %942 = vmatpush1.msra.mxu0 0.0
  %943 = vmatprep.subr.mxu0 0.0
  %944 = vmatpush1.msra.mxu0 0.0
  %945 = vmatprep.subr.mxu0 0.0
  %946 = vmatpush1.msra.mxu0 0.0
  %947 = vmatprep.subr.mxu0 0.0
  %948 = vmatpush1.msra.mxu0 0.0
  %949 = vmatprep.subr.mxu0 0.0
  %950 = vmatpush1.msra.mxu0 0.0
  %951 = vmatprep.subr.mxu0 0.0
  %952 = vmatpush1.msra.mxu0 0.0
  %953 = vmatprep.subr.mxu0 0.0
  %954 = vmatpush1.msra.mxu0 0.0
  %955 = vmatprep.subr.mxu0 0.0
  %956 = vmatpush1.msra.mxu0 0.0
  %957 = vmatprep.subr.mxu0 0.0
  %958 = vmatpush1.msra.mxu0 0.0
  %959 = vmatprep.subr.mxu0 0.0
  %960 = vmatpush1.msra.mxu0 0.0
  %961 = vmatprep.subr.mxu0 0.0
  %962 = vmatpush1.msra.mxu0 0.0
  %963 = vmatprep.subr.mxu0 0.0
  %964 = vmatpush1.msra.mxu0 0.0
  %965 = vmatprep.subr.mxu0 0.0
  %966 = vmatpush1.msra.mxu0 0.0
  %967 = vmatprep.subr.mxu0 0.0
  %968 = vmatpush1.msra.mxu0 0.0
  %969 = vmatprep.subr.mxu0 0.0
  %970 = vmatpush1.msra.mxu0 0.0
  %971 = vmatprep.subr.mxu0 0.0
  %972 = vmatpush1.msra.mxu0 0.0
  %973 = vmatprep.subr.mxu0 0.0
  %974 = vmatpush1.msra.mxu0 0.0
  %975 = vmatprep.subr.mxu0 0.0
  %976 = vmatpush1.msra.mxu0 0.0
  %977 = vmatprep.subr.mxu0 0.0
  %978 = vmatpush1.msra.mxu0 0.0
  %979 = vmatprep.subr.mxu0 0.0
  %980 = vmatpush1.msra.mxu0 0.0
  %981 = vmatprep.subr.mxu0 0.0
  %982 = vmatpush1.msra.mxu0 0.0
  %983 = vmatprep.subr.mxu0 0.0
  %984 = vmatpush1.msra.mxu0 0.0
  %985 = vmatprep.mubr.f32.mxu0 0.0
  %986 = vmatmul.mubr.f32.gmra.mrb[0].mxu0 %v919
  %v987 = vpop.f32.mrb[0].mxu0
  %v988 = vadd.f32 0.0, %v987
  %v989 = vpop.f32.mrb[0].mxu0
  %990 = vdwg.mxu0
  %v992 = vrot.slane %v988, 1
  %v995 = vadd.f32 %v913, %v988
  %v996 = vadd.f32 %v914, %v992
  %v997 = vtanh.pop %v995
  %v998 = vtanh.pop %v996
  %999 = vst.msk [vmem:[#allocation8 + $0x6] sm:$0x1] %vm469, %v997
  %1000 = vst.msk [vmem:[#allocation8 + $0x16] sm:$0x1] %vm469, %v998
  %v1001 = vld [vmem:[#allocation8 + $0x7] sm:$0x1]
  %v1002 = vld [vmem:[#allocation8 + $0x17] sm:$0x1]
  %v1005 = vrot.slane %v998, 7
  %v1006 = vsel %vm477, %v1005, %v997
  %v1007 = vsel %vm376, %v1006, 0
  %1009 = vmatprep.subr.mxu0 0.0
  %1010 = vmatpush1.msra.mxu0 %v381
  %1011 = vmatprep.subr.mxu0 0.0
  %1012 = vmatpush1.msra.mxu0 %v382
  %1013 = vmatprep.subr.mxu0 0.0
  %1014 = vmatpush1.msra.mxu0 %v383
  %1015 = vmatprep.subr.mxu0 0.0
  %1016 = vmatpush1.msra.mxu0 %v384
  %1017 = vmatprep.subr.mxu0 0.0
  %1018 = vmatpush1.msra.mxu0 0.0
  %1019 = vmatprep.subr.mxu0 0.0
  %1020 = vmatpush1.msra.mxu0 0.0
  %1021 = vmatprep.subr.mxu0 0.0
  %1022 = vmatpush1.msra.mxu0 0.0
  %1023 = vmatprep.subr.mxu0 0.0
  %1024 = vmatpush1.msra.mxu0 0.0
  %1025 = vmatprep.subr.mxu0 0.0
  %1026 = vmatpush1.msra.mxu0 0.0
  %1027 = vmatprep.subr.mxu0 0.0
  %1028 = vmatpush1.msra.mxu0 0.0
  %1029 = vmatprep.subr.mxu0 0.0
  %1030 = vmatpush1.msra.mxu0 0.0
  %1031 = vmatprep.subr.mxu0 0.0
  %1032 = vmatpush1.msra.mxu0 0.0
  %1033 = vmatprep.subr.mxu0 0.0
  %1034 = vmatpush1.msra.mxu0 0.0
  %1035 = vmatprep.subr.mxu0 0.0
  %1036 = vmatpush1.msra.mxu0 0.0
  %1037 = vmatprep.subr.mxu0 0.0
  %1038 = vmatpush1.msra.mxu0 0.0
  %1039 = vmatprep.subr.mxu0 0.0
  %1040 = vmatpush1.msra.mxu0 0.0
  %1041 = vmatprep.subr.mxu0 0.0
  %1042 = vmatpush1.msra.mxu0 0.0
  %1043 = vmatprep.subr.mxu0 0.0
  %1044 = vmatpush1.msra.mxu0 0.0
  %1045 = vmatprep.subr.mxu0 0.0
  %1046 = vmatpush1.msra.mxu0 0.0
  %1047 = vmatprep.subr.mxu0 0.0
  %1048 = vmatpush1.msra.mxu0 0.0
  %1049 = vmatprep.subr.mxu0 0.0
  %1050 = vmatpush1.msra.mxu0 0.0
  %1051 = vmatprep.subr.mxu0 0.0
  %1052 = vmatpush1.msra.mxu0 0.0
  %1053 = vmatprep.subr.mxu0 0.0
  %1054 = vmatpush1.msra.mxu0 0.0
  %1055 = vmatprep.subr.mxu0 0.0
  %1056 = vmatpush1.msra.mxu0 0.0
  %1057 = vmatprep.subr.mxu0 0.0
  %1058 = vmatpush1.msra.mxu0 0.0
  %1059 = vmatprep.subr.mxu0 0.0
  %1060 = vmatpush1.msra.mxu0 0.0
  %1061 = vmatprep.subr.mxu0 0.0
  %1062 = vmatpush1.msra.mxu0 0.0
  %1063 = vmatprep.subr.mxu0 0.0
  %1064 = vmatpush1.msra.mxu0 0.0
  %1065 = vmatprep.subr.mxu0 0.0
  %1066 = vmatpush1.msra.mxu0 0.0
  %1067 = vmatprep.subr.mxu0 0.0
  %1068 = vmatpush1.msra.mxu0 0.0
  %1069 = vmatprep.subr.mxu0 0.0
  %1070 = vmatpush1.msra.mxu0 0.0
  %1071 = vmatprep.subr.mxu0 0.0
  %1072 = vmatpush1.msra.mxu0 0.0
  %1073 = vmatprep.mubr.f32.mxu0 0.0
  %1074 = vmatmul.mubr.f32.gmra.mrb[0].mxu0 %v1007
  %v1075 = vpop.f32.mrb[0].mxu0
  %v1076 = vadd.f32 0.0, %v1075
  %v1077 = vpop.f32.mrb[0].mxu0
  %1078 = vdwg.mxu0
  %v1080 = vrot.slane %v1076, 1
  %v1083 = vadd.f32 %v1001, %v1076
  %v1084 = vadd.f32 %v1002, %v1080
  %v1085 = vtanh.pop %v1083
  %v1086 = vtanh.pop %v1084
  %1087 = vst.msk [vmem:[#allocation8 + $0x7] sm:$0x1] %vm469, %v1085
  %1088 = vst.msk [vmem:[#allocation8 + $0x17] sm:$0x1] %vm469, %v1086
  %v1089 = vld [vmem:[#allocation8 + $0x8] sm:$0x1]
  %v1090 = vld [vmem:[#allocation8 + $0x18] sm:$0x1]
  %v1093 = vrot.slane %v1086, 7
  %v1094 = vsel %vm477, %v1093, %v1085
  %v1095 = vsel %vm376, %v1094, 0
  %1097 = vmatprep.subr.mxu0 0.0
  %1098 = vmatpush1.msra.mxu0 %v381
  %1099 = vmatprep.subr.mxu0 0.0
  %1100 = vmatpush1.msra.mxu0 %v382
  %1101 = vmatprep.subr.mxu0 0.0
  %1102 = vmatpush1.msra.mxu0 %v383
  %1103 = vmatprep.subr.mxu0 0.0
  %1104 = vmatpush1.msra.mxu0 %v384
  %1105 = vmatprep.subr.mxu0 0.0
  %1106 = vmatpush1.msra.mxu0 0.0
  %1107 = vmatprep.subr.mxu0 0.0
  %1108 = vmatpush1.msra.mxu0 0.0
  %1109 = vmatprep.subr.mxu0 0.0
  %1110 = vmatpush1.msra.mxu0 0.0
  %1111 = vmatprep.subr.mxu0 0.0
  %1112 = vmatpush1.msra.mxu0 0.0
  %1113 = vmatprep.subr.mxu0 0.0
  %1114 = vmatpush1.msra.mxu0 0.0
  %1115 = vmatprep.subr.mxu0 0.0
  %1116 = vmatpush1.msra.mxu0 0.0
  %1117 = vmatprep.subr.mxu0 0.0
  %1118 = vmatpush1.msra.mxu0 0.0
  %1119 = vmatprep.subr.mxu0 0.0
  %1120 = vmatpush1.msra.mxu0 0.0
  %1121 = vmatprep.subr.mxu0 0.0
  %1122 = vmatpush1.msra.mxu0 0.0
  %1123 = vmatprep.subr.mxu0 0.0
  %1124 = vmatpush1.msra.mxu0 0.0
  %1125 = vmatprep.subr.mxu0 0.0
  %1126 = vmatpush1.msra.mxu0 0.0
  %1127 = vmatprep.subr.mxu0 0.0
  %1128 = vmatpush1.msra.mxu0 0.0
  %1129 = vmatprep.subr.mxu0 0.0
  %1130 = vmatpush1.msra.mxu0 0.0
  %1131 = vmatprep.subr.mxu0 0.0
  %1132 = vmatpush1.msra.mxu0 0.0
  %1133 = vmatprep.subr.mxu0 0.0
  %1134 = vmatpush1.msra.mxu0 0.0
  %1135 = vmatprep.subr.mxu0 0.0
  %1136 = vmatpush1.msra.mxu0 0.0
  %1137 = vmatprep.subr.mxu0 0.0
  %1138 = vmatpush1.msra.mxu0 0.0
  %1139 = vmatprep.subr.mxu0 0.0
  %1140 = vmatpush1.msra.mxu0 0.0
  %1141 = vmatprep.subr.mxu0 0.0
  %1142 = vmatpush1.msra.mxu0 0.0
  %1143 = vmatprep.subr.mxu0 0.0
  %1144 = vmatpush1.msra.mxu0 0.0
  %1145 = vmatprep.subr.mxu0 0.0
  %1146 = vmatpush1.msra.mxu0 0.0
  %1147 = vmatprep.subr.mxu0 0.0
  %1148 = vmatpush1.msra.mxu0 0.0
  %1149 = vmatprep.subr.mxu0 0.0
  %1150 = vmatpush1.msra.mxu0 0.0
  %1151 = vmatprep.subr.mxu0 0.0
  %1152 = vmatpush1.msra.mxu0 0.0
  %1153 = vmatprep.subr.mxu0 0.0
  %1154 = vmatpush1.msra.mxu0 0.0
  %1155 = vmatprep.subr.mxu0 0.0
  %1156 = vmatpush1.msra.mxu0 0.0
  %1157 = vmatprep.subr.mxu0 0.0
  %1158 = vmatpush1.msra.mxu0 0.0
  %1159 = vmatprep.subr.mxu0 0.0
  %1160 = vmatpush1.msra.mxu0 0.0
  %1161 = vmatprep.mubr.f32.mxu0 0.0
  %1162 = vmatmul.mubr.f32.gmra.mrb[0].mxu0 %v1095
  %v1163 = vpop.f32.mrb[0].mxu0
  %v1164 = vadd.f32 0.0, %v1163
  %v1165 = vpop.f32.mrb[0].mxu0
  %1166 = vdwg.mxu0
  %v1168 = vrot.slane %v1164, 1
  %v1171 = vadd.f32 %v1089, %v1164
  %v1172 = vadd.f32 %v1090, %v1168
  %v1173 = vtanh.pop %v1171
  %v1174 = vtanh.pop %v1172
  %1175 = vst.msk [vmem:[#allocation8 + $0x8] sm:$0x1] %vm469, %v1173
  %1176 = vst.msk [vmem:[#allocation8 + $0x18] sm:$0x1] %vm469, %v1174
  %v1177 = vld [vmem:[#allocation8 + $0x9] sm:$0x1]
  %v1178 = vld [vmem:[#allocation8 + $0x19] sm:$0x1]
  %v1181 = vrot.slane %v1174, 7
  %v1182 = vsel %vm477, %v1181, %v1173
  %v1183 = vsel %vm376, %v1182, 0
  %1185 = vmatprep.subr.mxu0 0.0
  %1186 = vmatpush1.msra.mxu0 %v381
  %1187 = vmatprep.subr.mxu0 0.0
  %1188 = vmatpush1.msra.mxu0 %v382
  %1189 = vmatprep.subr.mxu0 0.0
  %1190 = vmatpush1.msra.mxu0 %v383
  %1191 = vmatprep.subr.mxu0 0.0
  %1192 = vmatpush1.msra.mxu0 %v384
  %1193 = vmatprep.subr.mxu0 0.0
  %1194 = vmatpush1.msra.mxu0 0.0
  %1195 = vmatprep.subr.mxu0 0.0
  %1196 = vmatpush1.msra.mxu0 0.0
  %1197 = vmatprep.subr.mxu0 0.0
  %1198 = vmatpush1.msra.mxu0 0.0
  %1199 = vmatprep.subr.mxu0 0.0
  %1200 = vmatpush1.msra.mxu0 0.0
  %1201 = vmatprep.subr.mxu0 0.0
  %1202 = vmatpush1.msra.mxu0 0.0
  %1203 = vmatprep.subr.mxu0 0.0
  %1204 = vmatpush1.msra.mxu0 0.0
  %1205 = vmatprep.subr.mxu0 0.0
  %1206 = vmatpush1.msra.mxu0 0.0
  %1207 = vmatprep.subr.mxu0 0.0
  %1208 = vmatpush1.msra.mxu0 0.0
  %1209 = vmatprep.subr.mxu0 0.0
  %1210 = vmatpush1.msra.mxu0 0.0
  %1211 = vmatprep.subr.mxu0 0.0
  %1212 = vmatpush1.msra.mxu0 0.0
  %1213 = vmatprep.subr.mxu0 0.0
  %1214 = vmatpush1.msra.mxu0 0.0
  %1215 = vmatprep.subr.mxu0 0.0
  %1216 = vmatpush1.msra.mxu0 0.0
  %1217 = vmatprep.subr.mxu0 0.0
  %1218 = vmatpush1.msra.mxu0 0.0
  %1219 = vmatprep.subr.mxu0 0.0
  %1220 = vmatpush1.msra.mxu0 0.0
  %1221 = vmatprep.subr.mxu0 0.0
  %1222 = vmatpush1.msra.mxu0 0.0
  %1223 = vmatprep.subr.mxu0 0.0
  %1224 = vmatpush1.msra.mxu0 0.0
  %1225 = vmatprep.subr.mxu0 0.0
  %1226 = vmatpush1.msra.mxu0 0.0
  %1227 = vmatprep.subr.mxu0 0.0
  %1228 = vmatpush1.msra.mxu0 0.0
  %1229 = vmatprep.subr.mxu0 0.0
  %1230 = vmatpush1.msra.mxu0 0.0
  %1231 = vmatprep.subr.mxu0 0.0
  %1232 = vmatpush1.msra.mxu0 0.0
  %1233 = vmatprep.subr.mxu0 0.0
  %1234 = vmatpush1.msra.mxu0 0.0
  %1235 = vmatprep.subr.mxu0 0.0
  %1236 = vmatpush1.msra.mxu0 0.0
  %1237 = vmatprep.subr.mxu0 0.0
  %1238 = vmatpush1.msra.mxu0 0.0
  %1239 = vmatprep.subr.mxu0 0.0
  %1240 = vmatpush1.msra.mxu0 0.0
  %1241 = vmatprep.subr.mxu0 0.0
  %1242 = vmatpush1.msra.mxu0 0.0
  %1243 = vmatprep.subr.mxu0 0.0
  %1244 = vmatpush1.msra.mxu0 0.0
  %1245 = vmatprep.subr.mxu0 0.0
  %1246 = vmatpush1.msra.mxu0 0.0
  %1247 = vmatprep.subr.mxu0 0.0
  %1248 = vmatpush1.msra.mxu0 0.0
  %1249 = vmatprep.mubr.f32.mxu0 0.0
  %1250 = vmatmul.mubr.f32.gmra.mrb[0].mxu0 %v1183
  %v1251 = vpop.f32.mrb[0].mxu0
  %v1252 = vadd.f32 0.0, %v1251
  %v1253 = vpop.f32.mrb[0].mxu0
  %1254 = vdwg.mxu0
  %v1256 = vrot.slane %v1252, 1
  %v1259 = vadd.f32 %v1177, %v1252
  %v1260 = vadd.f32 %v1178, %v1256
  %v1261 = vtanh.pop %v1259
  %v1262 = vtanh.pop %v1260
  %1263 = vst.msk [vmem:[#allocation8 + $0x9] sm:$0x1] %vm469, %v1261
  %1264 = vst.msk [vmem:[#allocation8 + $0x19] sm:$0x1] %vm469, %v1262
  %v1265 = vld [vmem:[#allocation8 + $0xa] sm:$0x1]
  %v1266 = vld [vmem:[#allocation8 + $0x1a] sm:$0x1]
  %v1269 = vrot.slane %v1262, 7
  %v1270 = vsel %vm477, %v1269, %v1261
  %v1271 = vsel %vm376, %v1270, 0
  %1273 = vmatprep.subr.mxu0 0.0
  %1274 = vmatpush1.msra.mxu0 %v381
  %1275 = vmatprep.subr.mxu0 0.0
  %1276 = vmatpush1.msra.mxu0 %v382
  %1277 = vmatprep.subr.mxu0 0.0
  %1278 = vmatpush1.msra.mxu0 %v383
  %1279 = vmatprep.subr.mxu0 0.0
  %1280 = vmatpush1.msra.mxu0 %v384
  %1281 = vmatprep.subr.mxu0 0.0
  %1282 = vmatpush1.msra.mxu0 0.0
  %1283 = vmatprep.subr.mxu0 0.0
  %1284 = vmatpush1.msra.mxu0 0.0
  %1285 = vmatprep.subr.mxu0 0.0
  %1286 = vmatpush1.msra.mxu0 0.0
  %1287 = vmatprep.subr.mxu0 0.0
  %1288 = vmatpush1.msra.mxu0 0.0
  %1289 = vmatprep.subr.mxu0 0.0
  %1290 = vmatpush1.msra.mxu0 0.0
  %1291 = vmatprep.subr.mxu0 0.0
  %1292 = vmatpush1.msra.mxu0 0.0
  %1293 = vmatprep.subr.mxu0 0.0
  %1294 = vmatpush1.msra.mxu0 0.0
  %1295 = vmatprep.subr.mxu0 0.0
  %1296 = vmatpush1.msra.mxu0 0.0
  %1297 = vmatprep.subr.mxu0 0.0
  %1298 = vmatpush1.msra.mxu0 0.0
  %1299 = vmatprep.subr.mxu0 0.0
  %1300 = vmatpush1.msra.mxu0 0.0
  %1301 = vmatprep.subr.mxu0 0.0
  %1302 = vmatpush1.msra.mxu0 0.0
  %1303 = vmatprep.subr.mxu0 0.0
  %1304 = vmatpush1.msra.mxu0 0.0
  %1305 = vmatprep.subr.mxu0 0.0
  %1306 = vmatpush1.msra.mxu0 0.0
  %1307 = vmatprep.subr.mxu0 0.0
  %1308 = vmatpush1.msra.mxu0 0.0
  %1309 = vmatprep.subr.mxu0 0.0
  %1310 = vmatpush1.msra.mxu0 0.0
  %1311 = vmatprep.subr.mxu0 0.0
  %1312 = vmatpush1.msra.mxu0 0.0
  %1313 = vmatprep.subr.mxu0 0.0
  %1314 = vmatpush1.msra.mxu0 0.0
  %1315 = vmatprep.subr.mxu0 0.0
  %1316 = vmatpush1.msra.mxu0 0.0
  %1317 = vmatprep.subr.mxu0 0.0
  %1318 = vmatpush1.msra.mxu0 0.0
  %1319 = vmatprep.subr.mxu0 0.0
  %1320 = vmatpush1.msra.mxu0 0.0
  %1321 = vmatprep.subr.mxu0 0.0
  %1322 = vmatpush1.msra.mxu0 0.0
  %1323 = vmatprep.subr.mxu0 0.0
  %1324 = vmatpush1.msra.mxu0 0.0
  %1325 = vmatprep.subr.mxu0 0.0
  %1326 = vmatpush1.msra.mxu0 0.0
  %1327 = vmatprep.subr.mxu0 0.0
  %1328 = vmatpush1.msra.mxu0 0.0
  %1329 = vmatprep.subr.mxu0 0.0
  %1330 = vmatpush1.msra.mxu0 0.0
  %1331 = vmatprep.subr.mxu0 0.0
  %1332 = vmatpush1.msra.mxu0 0.0
  %1333 = vmatprep.subr.mxu0 0.0
  %1334 = vmatpush1.msra.mxu0 0.0
  %1335 = vmatprep.subr.mxu0 0.0
  %1336 = vmatpush1.msra.mxu0 0.0
  %1337 = vmatprep.mubr.f32.mxu0 0.0
  %1338 = vmatmul.mubr.f32.gmra.mrb[0].mxu0 %v1271
  %v1339 = vpop.f32.mrb[0].mxu0
  %v1340 = vadd.f32 0.0, %v1339
  %v1341 = vpop.f32.mrb[0].mxu0
  %1342 = vdwg.mxu0
  %v1344 = vrot.slane %v1340, 1
  %v1347 = vadd.f32 %v1265, %v1340
  %v1348 = vadd.f32 %v1266, %v1344
  %v1349 = vtanh.pop %v1347
  %v1350 = vtanh.pop %v1348
  %1351 = vst.msk [vmem:[#allocation8 + $0xa] sm:$0x1] %vm469, %v1349
  %1352 = vst.msk [vmem:[#allocation8 + $0x1a] sm:$0x1] %vm469, %v1350
  %v1353 = vld [vmem:[#allocation8 + $0xb] sm:$0x1]
  %v1354 = vld [vmem:[#allocation8 + $0x1b] sm:$0x1]
  %v1357 = vrot.slane %v1350, 7
  %v1358 = vsel %vm477, %v1357, %v1349
  %v1359 = vsel %vm376, %v1358, 0
  %1361 = vmatprep.subr.mxu0 0.0
  %1362 = vmatpush1.msra.mxu0 %v381
  %1363 = vmatprep.subr.mxu0 0.0
  %1364 = vmatpush1.msra.mxu0 %v382
  %1365 = vmatprep.subr.mxu0 0.0
  %1366 = vmatpush1.msra.mxu0 %v383
  %1367 = vmatprep.subr.mxu0 0.0
  %1368 = vmatpush1.msra.mxu0 %v384
  %1369 = vmatprep.subr.mxu0 0.0
  %1370 = vmatpush1.msra.mxu0 0.0
  %1371 = vmatprep.subr.mxu0 0.0
  %1372 = vmatpush1.msra.mxu0 0.0
  %1373 = vmatprep.subr.mxu0 0.0
  %1374 = vmatpush1.msra.mxu0 0.0
  %1375 = vmatprep.subr.mxu0 0.0
  %1376 = vmatpush1.msra.mxu0 0.0
  %1377 = vmatprep.subr.mxu0 0.0
  %1378 = vmatpush1.msra.mxu0 0.0
  %1379 = vmatprep.subr.mxu0 0.0
  %1380 = vmatpush1.msra.mxu0 0.0
  %1381 = vmatprep.subr.mxu0 0.0
  %1382 = vmatpush1.msra.mxu0 0.0
  %1383 = vmatprep.subr.mxu0 0.0
  %1384 = vmatpush1.msra.mxu0 0.0
  %1385 = vmatprep.subr.mxu0 0.0
  %1386 = vmatpush1.msra.mxu0 0.0
  %1387 = vmatprep.subr.mxu0 0.0
  %1388 = vmatpush1.msra.mxu0 0.0
  %1389 = vmatprep.subr.mxu0 0.0
  %1390 = vmatpush1.msra.mxu0 0.0
  %1391 = vmatprep.subr.mxu0 0.0
  %1392 = vmatpush1.msra.mxu0 0.0
  %1393 = vmatprep.subr.mxu0 0.0
  %1394 = vmatpush1.msra.mxu0 0.0
  %1395 = vmatprep.subr.mxu0 0.0
  %1396 = vmatpush1.msra.mxu0 0.0
  %1397 = vmatprep.subr.mxu0 0.0
  %1398 = vmatpush1.msra.mxu0 0.0
  %1399 = vmatprep.subr.mxu0 0.0
  %1400 = vmatpush1.msra.mxu0 0.0
  %1401 = vmatprep.subr.mxu0 0.0
  %1402 = vmatpush1.msra.mxu0 0.0
  %1403 = vmatprep.subr.mxu0 0.0
  %1404 = vmatpush1.msra.mxu0 0.0
  %1405 = vmatprep.subr.mxu0 0.0
  %1406 = vmatpush1.msra.mxu0 0.0
  %1407 = vmatprep.subr.mxu0 0.0
  %1408 = vmatpush1.msra.mxu0 0.0
  %1409 = vmatprep.subr.mxu0 0.0
  %1410 = vmatpush1.msra.mxu0 0.0
  %1411 = vmatprep.subr.mxu0 0.0
  %1412 = vmatpush1.msra.mxu0 0.0
  %1413 = vmatprep.subr.mxu0 0.0
  %1414 = vmatpush1.msra.mxu0 0.0
  %1415 = vmatprep.subr.mxu0 0.0
  %1416 = vmatpush1.msra.mxu0 0.0
  %1417 = vmatprep.subr.mxu0 0.0
  %1418 = vmatpush1.msra.mxu0 0.0
  %1419 = vmatprep.subr.mxu0 0.0
  %1420 = vmatpush1.msra.mxu0 0.0
  %1421 = vmatprep.subr.mxu0 0.0
  %1422 = vmatpush1.msra.mxu0 0.0
  %1423 = vmatprep.subr.mxu0 0.0
  %1424 = vmatpush1.msra.mxu0 0.0
  %1425 = vmatprep.mubr.f32.mxu0 0.0
  %1426 = vmatmul.mubr.f32.gmra.mrb[0].mxu0 %v1359
  %v1427 = vpop.f32.mrb[0].mxu0
  %v1428 = vadd.f32 0.0, %v1427
  %v1429 = vpop.f32.mrb[0].mxu0
  %1430 = vdwg.mxu0
  %v1432 = vrot.slane %v1428, 1
  %v1435 = vadd.f32 %v1353, %v1428
  %v1436 = vadd.f32 %v1354, %v1432
  %v1437 = vtanh.pop %v1435
  %v1438 = vtanh.pop %v1436
  %1439 = vst.msk [vmem:[#allocation8 + $0xb] sm:$0x1] %vm469, %v1437
  %1440 = vst.msk [vmem:[#allocation8 + $0x1b] sm:$0x1] %vm469, %v1438
  %v1441 = vld [vmem:[#allocation8 + $0xc] sm:$0x1]
  %v1442 = vld [vmem:[#allocation8 + $0x1c] sm:$0x1]
  %v1445 = vrot.slane %v1438, 7
  %v1446 = vsel %vm477, %v1445, %v1437
  %v1447 = vsel %vm376, %v1446, 0
  %1449 = vmatprep.subr.mxu0 0.0
  %1450 = vmatpush1.msra.mxu0 %v381
  %1451 = vmatprep.subr.mxu0 0.0
  %1452 = vmatpush1.msra.mxu0 %v382
  %1453 = vmatprep.subr.mxu0 0.0
  %1454 = vmatpush1.msra.mxu0 %v383
  %1455 = vmatprep.subr.mxu0 0.0
  %1456 = vmatpush1.msra.mxu0 %v384
  %1457 = vmatprep.subr.mxu0 0.0
  %1458 = vmatpush1.msra.mxu0 0.0
  %1459 = vmatprep.subr.mxu0 0.0
  %1460 = vmatpush1.msra.mxu0 0.0
  %1461 = vmatprep.subr.mxu0 0.0
  %1462 = vmatpush1.msra.mxu0 0.0
  %1463 = vmatprep.subr.mxu0 0.0
  %1464 = vmatpush1.msra.mxu0 0.0
  %1465 = vmatprep.subr.mxu0 0.0
  %1466 = vmatpush1.msra.mxu0 0.0
  %1467 = vmatprep.subr.mxu0 0.0
  %1468 = vmatpush1.msra.mxu0 0.0
  %1469 = vmatprep.subr.mxu0 0.0
  %1470 = vmatpush1.msra.mxu0 0.0
  %1471 = vmatprep.subr.mxu0 0.0
  %1472 = vmatpush1.msra.mxu0 0.0
  %1473 = vmatprep.subr.mxu0 0.0
  %1474 = vmatpush1.msra.mxu0 0.0
  %1475 = vmatprep.subr.mxu0 0.0
  %1476 = vmatpush1.msra.mxu0 0.0
  %1477 = vmatprep.subr.mxu0 0.0
  %1478 = vmatpush1.msra.mxu0 0.0
  %1479 = vmatprep.subr.mxu0 0.0
  %1480 = vmatpush1.msra.mxu0 0.0
  %1481 = vmatprep.subr.mxu0 0.0
  %1482 = vmatpush1.msra.mxu0 0.0
  %1483 = vmatprep.subr.mxu0 0.0
  %1484 = vmatpush1.msra.mxu0 0.0
  %1485 = vmatprep.subr.mxu0 0.0
  %1486 = vmatpush1.msra.mxu0 0.0
  %1487 = vmatprep.subr.mxu0 0.0
  %1488 = vmatpush1.msra.mxu0 0.0
  %1489 = vmatprep.subr.mxu0 0.0
  %1490 = vmatpush1.msra.mxu0 0.0
  %1491 = vmatprep.subr.mxu0 0.0
  %1492 = vmatpush1.msra.mxu0 0.0
  %1493 = vmatprep.subr.mxu0 0.0
  %1494 = vmatpush1.msra.mxu0 0.0
  %1495 = vmatprep.subr.mxu0 0.0
  %1496 = vmatpush1.msra.mxu0 0.0
  %1497 = vmatprep.subr.mxu0 0.0
  %1498 = vmatpush1.msra.mxu0 0.0
  %1499 = vmatprep.subr.mxu0 0.0
  %1500 = vmatpush1.msra.mxu0 0.0
  %1501 = vmatprep.subr.mxu0 0.0
  %1502 = vmatpush1.msra.mxu0 0.0
  %1503 = vmatprep.subr.mxu0 0.0
  %1504 = vmatpush1.msra.mxu0 0.0
  %1505 = vmatprep.subr.mxu0 0.0
  %1506 = vmatpush1.msra.mxu0 0.0
  %1507 = vmatprep.subr.mxu0 0.0
  %1508 = vmatpush1.msra.mxu0 0.0
  %1509 = vmatprep.subr.mxu0 0.0
  %1510 = vmatpush1.msra.mxu0 0.0
  %1511 = vmatprep.subr.mxu0 0.0
  %1512 = vmatpush1.msra.mxu0 0.0
  %1513 = vmatprep.mubr.f32.mxu0 0.0
  %1514 = vmatmul.mubr.f32.gmra.mrb[0].mxu0 %v1447
  %v1515 = vpop.f32.mrb[0].mxu0
  %v1516 = vadd.f32 0.0, %v1515
  %v1517 = vpop.f32.mrb[0].mxu0
  %1518 = vdwg.mxu0
  %v1520 = vrot.slane %v1516, 1
  %v1523 = vadd.f32 %v1441, %v1516
  %v1524 = vadd.f32 %v1442, %v1520
  %v1525 = vtanh.pop %v1523
  %v1526 = vtanh.pop %v1524
  %1527 = vst.msk [vmem:[#allocation8 + $0xc] sm:$0x1] %vm469, %v1525
  %1528 = vst.msk [vmem:[#allocation8 + $0x1c] sm:$0x1] %vm469, %v1526
  %v1529 = vld [vmem:[#allocation8 + $0xd] sm:$0x1]
  %v1530 = vld [vmem:[#allocation8 + $0x1d] sm:$0x1]
  %v1533 = vrot.slane %v1526, 7
  %v1534 = vsel %vm477, %v1533, %v1525
  %v1535 = vsel %vm376, %v1534, 0
  %1537 = vmatprep.subr.mxu0 0.0
  %1538 = vmatpush1.msra.mxu0 %v381
  %1539 = vmatprep.subr.mxu0 0.0
  %1540 = vmatpush1.msra.mxu0 %v382
  %1541 = vmatprep.subr.mxu0 0.0
  %1542 = vmatpush1.msra.mxu0 %v383
  %1543 = vmatprep.subr.mxu0 0.0
  %1544 = vmatpush1.msra.mxu0 %v384
  %1545 = vmatprep.subr.mxu0 0.0
  %1546 = vmatpush1.msra.mxu0 0.0
  %1547 = vmatprep.subr.mxu0 0.0
  %1548 = vmatpush1.msra.mxu0 0.0
  %1549 = vmatprep.subr.mxu0 0.0
  %1550 = vmatpush1.msra.mxu0 0.0
  %1551 = vmatprep.subr.mxu0 0.0
  %1552 = vmatpush1.msra.mxu0 0.0
  %1553 = vmatprep.subr.mxu0 0.0
  %1554 = vmatpush1.msra.mxu0 0.0
  %1555 = vmatprep.subr.mxu0 0.0
  %1556 = vmatpush1.msra.mxu0 0.0
  %1557 = vmatprep.subr.mxu0 0.0
  %1558 = vmatpush1.msra.mxu0 0.0
  %1559 = vmatprep.subr.mxu0 0.0
  %1560 = vmatpush1.msra.mxu0 0.0
  %1561 = vmatprep.subr.mxu0 0.0
  %1562 = vmatpush1.msra.mxu0 0.0
  %1563 = vmatprep.subr.mxu0 0.0
  %1564 = vmatpush1.msra.mxu0 0.0
  %1565 = vmatprep.subr.mxu0 0.0
  %1566 = vmatpush1.msra.mxu0 0.0
  %1567 = vmatprep.subr.mxu0 0.0
  %1568 = vmatpush1.msra.mxu0 0.0
  %1569 = vmatprep.subr.mxu0 0.0
  %1570 = vmatpush1.msra.mxu0 0.0
  %1571 = vmatprep.subr.mxu0 0.0
  %1572 = vmatpush1.msra.mxu0 0.0
  %1573 = vmatprep.subr.mxu0 0.0
  %1574 = vmatpush1.msra.mxu0 0.0
  %1575 = vmatprep.subr.mxu0 0.0
  %1576 = vmatpush1.msra.mxu0 0.0
  %1577 = vmatprep.subr.mxu0 0.0
  %1578 = vmatpush1.msra.mxu0 0.0
  %1579 = vmatprep.subr.mxu0 0.0
  %1580 = vmatpush1.msra.mxu0 0.0
  %1581 = vmatprep.subr.mxu0 0.0
  %1582 = vmatpush1.msra.mxu0 0.0
  %1583 = vmatprep.subr.mxu0 0.0
  %1584 = vmatpush1.msra.mxu0 0.0
  %1585 = vmatprep.subr.mxu0 0.0
  %1586 = vmatpush1.msra.mxu0 0.0
  %1587 = vmatprep.subr.mxu0 0.0
  %1588 = vmatpush1.msra.mxu0 0.0
  %1589 = vmatprep.subr.mxu0 0.0
  %1590 = vmatpush1.msra.mxu0 0.0
  %1591 = vmatprep.subr.mxu0 0.0
  %1592 = vmatpush1.msra.mxu0 0.0
  %1593 = vmatprep.subr.mxu0 0.0
  %1594 = vmatpush1.msra.mxu0 0.0
  %1595 = vmatprep.subr.mxu0 0.0
  %1596 = vmatpush1.msra.mxu0 0.0
  %1597 = vmatprep.subr.mxu0 0.0
  %1598 = vmatpush1.msra.mxu0 0.0
  %1599 = vmatprep.subr.mxu0 0.0
  %1600 = vmatpush1.msra.mxu0 0.0
  %1601 = vmatprep.mubr.f32.mxu0 0.0
  %1602 = vmatmul.mubr.f32.gmra.mrb[0].mxu0 %v1535
  %v1603 = vpop.f32.mrb[0].mxu0
  %v1604 = vadd.f32 0.0, %v1603
  %v1605 = vpop.f32.mrb[0].mxu0
  %1606 = vdwg.mxu0
  %v1608 = vrot.slane %v1604, 1
  %v1611 = vadd.f32 %v1529, %v1604
  %v1612 = vadd.f32 %v1530, %v1608
  %v1613 = vtanh.pop %v1611
  %v1614 = vtanh.pop %v1612
  %1615 = vst.msk [vmem:[#allocation8 + $0xd] sm:$0x1] %vm469, %v1613
  %1616 = vst.msk [vmem:[#allocation8 + $0x1d] sm:$0x1] %vm469, %v1614
  %v1617 = vld [vmem:[#allocation8 + $0xe] sm:$0x1]
  %v1618 = vld [vmem:[#allocation8 + $0x1e] sm:$0x1]
  %v1621 = vrot.slane %v1614, 7
  %v1622 = vsel %vm477, %v1621, %v1613
  %v1623 = vsel %vm376, %v1622, 0
  %1625 = vmatprep.subr.mxu0 0.0
  %1626 = vmatpush1.msra.mxu0 %v381
  %1627 = vmatprep.subr.mxu0 0.0
  %1628 = vmatpush1.msra.mxu0 %v382
  %1629 = vmatprep.subr.mxu0 0.0
  %1630 = vmatpush1.msra.mxu0 %v383
  %1631 = vmatprep.subr.mxu0 0.0
  %1632 = vmatpush1.msra.mxu0 %v384
  %1633 = vmatprep.subr.mxu0 0.0
  %1634 = vmatpush1.msra.mxu0 0.0
  %1635 = vmatprep.subr.mxu0 0.0
  %1636 = vmatpush1.msra.mxu0 0.0
  %1637 = vmatprep.subr.mxu0 0.0
  %1638 = vmatpush1.msra.mxu0 0.0
  %1639 = vmatprep.subr.mxu0 0.0
  %1640 = vmatpush1.msra.mxu0 0.0
  %1641 = vmatprep.subr.mxu0 0.0
  %1642 = vmatpush1.msra.mxu0 0.0
  %1643 = vmatprep.subr.mxu0 0.0
  %1644 = vmatpush1.msra.mxu0 0.0
  %1645 = vmatprep.subr.mxu0 0.0
  %1646 = vmatpush1.msra.mxu0 0.0
  %1647 = vmatprep.subr.mxu0 0.0
  %1648 = vmatpush1.msra.mxu0 0.0
  %1649 = vmatprep.subr.mxu0 0.0
  %1650 = vmatpush1.msra.mxu0 0.0
  %1651 = vmatprep.subr.mxu0 0.0
  %1652 = vmatpush1.msra.mxu0 0.0
  %1653 = vmatprep.subr.mxu0 0.0
  %1654 = vmatpush1.msra.mxu0 0.0
  %1655 = vmatprep.subr.mxu0 0.0
  %1656 = vmatpush1.msra.mxu0 0.0
  %1657 = vmatprep.subr.mxu0 0.0
  %1658 = vmatpush1.msra.mxu0 0.0
  %1659 = vmatprep.subr.mxu0 0.0
  %1660 = vmatpush1.msra.mxu0 0.0
  %1661 = vmatprep.subr.mxu0 0.0
  %1662 = vmatpush1.msra.mxu0 0.0
  %1663 = vmatprep.subr.mxu0 0.0
  %1664 = vmatpush1.msra.mxu0 0.0
  %1665 = vmatprep.subr.mxu0 0.0
  %1666 = vmatpush1.msra.mxu0 0.0
  %1667 = vmatprep.subr.mxu0 0.0
  %1668 = vmatpush1.msra.mxu0 0.0
  %1669 = vmatprep.subr.mxu0 0.0
  %1670 = vmatpush1.msra.mxu0 0.0
  %1671 = vmatprep.subr.mxu0 0.0
  %1672 = vmatpush1.msra.mxu0 0.0
  %1673 = vmatprep.subr.mxu0 0.0
  %1674 = vmatpush1.msra.mxu0 0.0
  %1675 = vmatprep.subr.mxu0 0.0
  %1676 = vmatpush1.msra.mxu0 0.0
  %1677 = vmatprep.subr.mxu0 0.0
  %1678 = vmatpush1.msra.mxu0 0.0
  %1679 = vmatprep.subr.mxu0 0.0
  %1680 = vmatpush1.msra.mxu0 0.0
  %1681 = vmatprep.subr.mxu0 0.0
  %1682 = vmatpush1.msra.mxu0 0.0
  %1683 = vmatprep.subr.mxu0 0.0
  %1684 = vmatpush1.msra.mxu0 0.0
  %1685 = vmatprep.subr.mxu0 0.0
  %1686 = vmatpush1.msra.mxu0 0.0
  %1687 = vmatprep.subr.mxu0 0.0
  %1688 = vmatpush1.msra.mxu0 0.0
  %1689 = vmatprep.mubr.f32.mxu0 0.0
  %1690 = vmatmul.mubr.f32.gmra.mrb[0].mxu0 %v1623
  %v1691 = vpop.f32.mrb[0].mxu0
  %v1692 = vadd.f32 0.0, %v1691
  %v1693 = vpop.f32.mrb[0].mxu0
  %1694 = vdwg.mxu0
  %v1696 = vrot.slane %v1692, 1
  %v1699 = vadd.f32 %v1617, %v1692
  %v1700 = vadd.f32 %v1618, %v1696
  %v1701 = vtanh.pop %v1699
  %v1702 = vtanh.pop %v1700
  %1703 = vst.msk [vmem:[#allocation8 + $0xe] sm:$0x1] %vm469, %v1701
  %1704 = vst.msk [vmem:[#allocation8 + $0x1e] sm:$0x1] %vm469, %v1702
  %v1705 = vld [vmem:[#allocation8 + $0xf] sm:$0x1]
  %v1706 = vld [vmem:[#allocation8 + $0x1f] sm:$0x1]
  %v1709 = vrot.slane %v1702, 7
  %v1710 = vsel %vm477, %v1709, %v1701
  %v1711 = vsel %vm376, %v1710, 0
  %1713 = vmatprep.subr.mxu0 0.0
  %1714 = vmatpush1.msra.mxu0 %v381
  %1715 = vmatprep.subr.mxu0 0.0
  %1716 = vmatpush1.msra.mxu0 %v382
  %1717 = vmatprep.subr.mxu0 0.0
  %1718 = vmatpush1.msra.mxu0 %v383
  %1719 = vmatprep.subr.mxu0 0.0
  %1720 = vmatpush1.msra.mxu0 %v384
  %1721 = vmatprep.subr.mxu0 0.0
  %1722 = vmatpush1.msra.mxu0 0.0
  %1723 = vmatprep.subr.mxu0 0.0
  %1724 = vmatpush1.msra.mxu0 0.0
  %1725 = vmatprep.subr.mxu0 0.0
  %1726 = vmatpush1.msra.mxu0 0.0
  %1727 = vmatprep.subr.mxu0 0.0
  %1728 = vmatpush1.msra.mxu0 0.0
  %1729 = vmatprep.subr.mxu0 0.0
  %1730 = vmatpush1.msra.mxu0 0.0
  %1731 = vmatprep.subr.mxu0 0.0
  %1732 = vmatpush1.msra.mxu0 0.0
  %1733 = vmatprep.subr.mxu0 0.0
  %1734 = vmatpush1.msra.mxu0 0.0
  %1735 = vmatprep.subr.mxu0 0.0
  %1736 = vmatpush1.msra.mxu0 0.0
  %1737 = vmatprep.subr.mxu0 0.0
  %1738 = vmatpush1.msra.mxu0 0.0
  %1739 = vmatprep.subr.mxu0 0.0
  %1740 = vmatpush1.msra.mxu0 0.0
  %1741 = vmatprep.subr.mxu0 0.0
  %1742 = vmatpush1.msra.mxu0 0.0
  %1743 = vmatprep.subr.mxu0 0.0
  %1744 = vmatpush1.msra.mxu0 0.0
  %1745 = vmatprep.subr.mxu0 0.0
  %1746 = vmatpush1.msra.mxu0 0.0
  %1747 = vmatprep.subr.mxu0 0.0
  %1748 = vmatpush1.msra.mxu0 0.0
  %1749 = vmatprep.subr.mxu0 0.0
  %1750 = vmatpush1.msra.mxu0 0.0
  %1751 = vmatprep.subr.mxu0 0.0
  %1752 = vmatpush1.msra.mxu0 0.0
  %1753 = vmatprep.subr.mxu0 0.0
  %1754 = vmatpush1.msra.mxu0 0.0
  %1755 = vmatprep.subr.mxu0 0.0
  %1756 = vmatpush1.msra.mxu0 0.0
  %1757 = vmatprep.subr.mxu0 0.0
  %1758 = vmatpush1.msra.mxu0 0.0
  %1759 = vmatprep.subr.mxu0 0.0
  %1760 = vmatpush1.msra.mxu0 0.0
  %1761 = vmatprep.subr.mxu0 0.0
  %1762 = vmatpush1.msra.mxu0 0.0
  %1763 = vmatprep.subr.mxu0 0.0
  %1764 = vmatpush1.msra.mxu0 0.0
  %1765 = vmatprep.subr.mxu0 0.0
  %1766 = vmatpush1.msra.mxu0 0.0
  %1767 = vmatprep.subr.mxu0 0.0
  %1768 = vmatpush1.msra.mxu0 0.0
  %1769 = vmatprep.subr.mxu0 0.0
  %1770 = vmatpush1.msra.mxu0 0.0
  %1771 = vmatprep.subr.mxu0 0.0
  %1772 = vmatpush1.msra.mxu0 0.0
  %1773 = vmatprep.subr.mxu0 0.0
  %1774 = vmatpush1.msra.mxu0 0.0
  %1775 = vmatprep.subr.mxu0 0.0
  %1776 = vmatpush1.msra.mxu0 0.0
  %1777 = vmatprep.mubr.f32.mxu0 0.0
  %1778 = vmatmul.mubr.f32.gmra.mrb[0].mxu0 %v1711
  %v1779 = vpop.f32.mrb[0].mxu0
  %v1780 = vadd.f32 0.0, %v1779
  %v1781 = vpop.f32.mrb[0].mxu0
  %1782 = vdwg.mxu0
  %v1784 = vrot.slane %v1780, 1
  %v1787 = vadd.f32 %v1705, %v1780
  %v1788 = vadd.f32 %v1706, %v1784
  %v1789 = vtanh.pop %v1787
  %v1790 = vtanh.pop %v1788
  %1791 = vst.msk [vmem:[#allocation8 + $0xf] sm:$0x1] %vm469, %v1789
  %1792 = vst.msk [vmem:[#allocation8 + $0x1f] sm:$0x1] %vm469, %v1790
  %v1795 = vrot.slane %v1790, 7
  %v1796 = vsel %vm477, %v1795, %v1789
  %vm1798 = vcmask 254976
  %1799 = vst.msk [vmem:[#allocation7] sm:$0x3] %vm1798, %v1796
  %v1800 = vld [vmem:[#allocation8] sm:$0xff]
  %v1801 = vld [vmem:[#allocation8 + $0x8] sm:$0xff]
  %v1802 = vld [vmem:[#allocation8 + $0x10] sm:$0xff]
  %v1803 = vld [vmem:[#allocation8 + $0x18] sm:$0xff]
  %v1804 = vld [vmem:[#allocation5] sm:$0xff]
  %v1805 = vld [vmem:[#allocation5 + $0x8] sm:$0xff]
  %v1806 = vld [vmem:[#allocation5 + $0x10] sm:$0xff]
  %v1807 = vld [vmem:[#allocation5 + $0x18] sm:$0xff]
  %v1808 = vld [vmem:[#allocation6] sm:$0x1]
  %v1810 = vlaneseq
  %v1811 = vshrl.u32 %v1810, 7
  %v1812 = vsub.s32 0, %v1811
  %v1813 = vrot.slane %v1808, %v1812
  %v1816 = vsel %vm376, %v1800, 0
  %v1819 = vsel %vm376, %v1801, 0
  %v1822 = vsel %vm376, %v1802, 0
  %v1825 = vsel %vm376, %v1803, 0
  %1827 = vmatprep.subr.mxu0 0.0
  %1828 = vmatpush1.msra.mxu0 %v1804
  %1829 = vmatprep.subr.mxu0 0.0
  %1830 = vmatpush1.msra.mxu0 %v1805
  %1831 = vmatprep.subr.mxu0 0.0
  %1832 = vmatpush1.msra.mxu0 %v1806
  %1833 = vmatprep.subr.mxu0 0.0
  %1834 = vmatpush1.msra.mxu0 %v1807
  %1835 = vmatprep.subr.mxu0 0.0
  %1836 = vmatpush1.msra.mxu0 0.0
  %1837 = vmatprep.subr.mxu0 0.0
  %1838 = vmatpush1.msra.mxu0 0.0
  %1839 = vmatprep.subr.mxu0 0.0
  %1840 = vmatpush1.msra.mxu0 0.0
  %1841 = vmatprep.subr.mxu0 0.0
  %1842 = vmatpush1.msra.mxu0 0.0
  %1843 = vmatprep.subr.mxu0 0.0
  %1844 = vmatpush1.msra.mxu0 0.0
  %1845 = vmatprep.subr.mxu0 0.0
  %1846 = vmatpush1.msra.mxu0 0.0
  %1847 = vmatprep.subr.mxu0 0.0
  %1848 = vmatpush1.msra.mxu0 0.0
  %1849 = vmatprep.subr.mxu0 0.0
  %1850 = vmatpush1.msra.mxu0 0.0
  %1851 = vmatprep.subr.mxu0 0.0
  %1852 = vmatpush1.msra.mxu0 0.0
  %1853 = vmatprep.subr.mxu0 0.0
  %1854 = vmatpush1.msra.mxu0 0.0
  %1855 = vmatprep.subr.mxu0 0.0
  %1856 = vmatpush1.msra.mxu0 0.0
  %1857 = vmatprep.subr.mxu0 0.0
  %1858 = vmatpush1.msra.mxu0 0.0
  %1859 = vmatprep.subr.mxu0 0.0
  %1860 = vmatpush1.msra.mxu0 0.0
  %1861 = vmatprep.subr.mxu0 0.0
  %1862 = vmatpush1.msra.mxu0 0.0
  %1863 = vmatprep.subr.mxu0 0.0
  %1864 = vmatpush1.msra.mxu0 0.0
  %1865 = vmatprep.subr.mxu0 0.0
  %1866 = vmatpush1.msra.mxu0 0.0
  %1867 = vmatprep.subr.mxu0 0.0
  %1868 = vmatpush1.msra.mxu0 0.0
  %1869 = vmatprep.subr.mxu0 0.0
  %1870 = vmatpush1.msra.mxu0 0.0
  %1871 = vmatprep.subr.mxu0 0.0
  %1872 = vmatpush1.msra.mxu0 0.0
  %1873 = vmatprep.subr.mxu0 0.0
  %1874 = vmatpush1.msra.mxu0 0.0
  %1875 = vmatprep.subr.mxu0 0.0
  %1876 = vmatpush1.msra.mxu0 0.0
  %1877 = vmatprep.subr.mxu0 0.0
  %1878 = vmatpush1.msra.mxu0 0.0
  %1879 = vmatprep.subr.mxu0 0.0
  %1880 = vmatpush1.msra.mxu0 0.0
  %1881 = vmatprep.subr.mxu0 0.0
  %1882 = vmatpush1.msra.mxu0 0.0
  %1883 = vmatprep.subr.mxu0 0.0
  %1884 = vmatpush1.msra.mxu0 0.0
  %1885 = vmatprep.subr.mxu0 0.0
  %1886 = vmatpush1.msra.mxu0 0.0
  %1887 = vmatprep.subr.mxu0 0.0
  %1888 = vmatpush1.msra.mxu0 0.0
  %1889 = vmatprep.subr.mxu0 0.0
  %1890 = vmatpush1.msra.mxu0 0.0
  %1891 = vmatprep.mubr.f32.mxu0 0.0
  %1892 = vmatmul.mubr.f32.gmra.mrb[0].mxu0 %v1816
  %v1893 = vpop.f32.mrb[0].mxu0
  %v1894 = vadd.f32 %v1813, %v1893
  %v1895 = vpop.f32.mrb[0].mxu0
  %1896 = vmatprep.mubr.f32.mxu0 0.0
  %1897 = vmatmul.mubr.f32.gmra.mrb[0].mxu0 %v1819
  %v1898 = vpop.f32.mrb[0].mxu0
  %v1899 = vadd.f32 %v1813, %v1898
  %v1900 = vpop.f32.mrb[0].mxu0
  %1901 = vmatprep.mubr.f32.mxu0 0.0
  %1902 = vmatmul.mubr.f32.gmra.mrb[0].mxu0 %v1822
  %v1903 = vpop.f32.mrb[0].mxu0
  %v1904 = vadd.f32 %v1813, %v1903
  %v1905 = vpop.f32.mrb[0].mxu0
  %1906 = vmatprep.mubr.f32.mxu0 0.0
  %1907 = vmatmul.mubr.f32.gmra.mrb[0].mxu0 %v1825
  %v1908 = vpop.f32.mrb[0].mxu0
  %v1909 = vadd.f32 %v1813, %v1908
  %v1910 = vpop.f32.mrb[0].mxu0
  %1911 = vdwg.mxu0
  %v1912 = vmax.f32 %v1894, 0.0
  %v1913 = vmax.f32 %v1899, 0.0
  %v1914 = vmax.f32 %v1904, 0.0
  %v1915 = vmax.f32 %v1909, 0.0
  %1916 = vst.msk [vmem:[%s6] sm:$0xff] %vm274, %v1912
  %1917 = vst.msk [vmem:[%s6 + $0x8] sm:$0xff] %vm274, %v1913
  %1918 = vst.msk [vmem:[%s6 + $0x10] sm:$0xff] %vm274, %v1914
  %1919 = vst.msk [vmem:[%s6 + $0x18] sm:$0xff] %vm274, %v1915
  // Predicated region
  $region173: #{tpu_custom_call.1} parent=0 // pred_check
    _
  $region174: #{tpu_custom_call.1} parent=0 // pred_check_branch
    %1921 = sbr.rel (0) target = $region176
  $region175: #{tpu_custom_call.1} parent=0 // pred_region
    _
  $region176: #{tpu_custom_call.1} parent=0 // pred_fallthru
    _
  // Predicated region
  $region177: #{tpu_custom_call.1} parent=0 // pred_check
    _
  $region178: #{tpu_custom_call.1} parent=0 // pred_check_branch
    %1923 = sbr.rel (0) target = $region180
  $region179: #{tpu_custom_call.1} parent=0 // pred_region
    _
  $region180: #{tpu_custom_call.1} parent=0 // pred_fallthru
    _

</llo_original>
